<compile_context>
chip_gen: v7x
topology: tpu7x:2x2x1
jax: 0.10.0
libtpu: 0.0.40
codegen_flags: <defaults>
</compile_context>

<pallas_src>
import jax
import jax.numpy as jnp
import numpy as np
from jax.experimental import pallas as pl
from jax.experimental.pallas import tpu as pltpu

# --- CascadeArgumentRegressor(1280, 160, 1, 6) configuration (from Harmonizer.__init__) ---
IN_CHANNELS = 1280
BASE_CHANNELS = 160
OUT_CHANNELS = 1
HEAD_NUM = 6        # [TEMPERATURE, BRIGHTNESS, CONTRAST, SATURATION, HIGHLIGHT, SHADOW]
F_DIM = 160         # self.f = nn.Linear(in_channels, 160)
OUT_PAD = 128       # lane-padded kernel output width (>= HEAD_NUM * OUT_CHANNELS)
BATCH_BLOCK = 32    # batch tile (throughput-sized for v5e/v6e; still safe on v7x VMEM)
C_CHUNK = 320       # channel-reduction chunk (1280 / 320 = 4 pipelined steps)


def _regressor_kernel(x_ref, w_ref, b_ref, out_ref):
    """Fused AdaptiveAvgPool2d((1,1)) + collapsed affine regressor, accumulated over C chunks.

    x_ref:   (nb, c_chunk, HW)  enc32x batch/channel tile, native channels-major layout
    w_ref:   (c_chunk, OUT_PAD) bf16  collapsed affine weight chunk (pool scale folded in)
    b_ref:   (1, OUT_PAD)       f32   collapsed affine bias
    out_ref: (nb, OUT_PAD)      f32   pred_args live in lanes [0, HEAD_NUM); rest is padding
    """
    k = pl.program_id(1)

    @pl.when(k == 0)
    def _init():
        out_ref[...] = jnp.broadcast_to(b_ref[...], out_ref.shape)

    # AdaptiveAvgPool2d((1,1)) == mean over the flattened spatial (lane) axis.  Only the raw
    # sum is computed here; the 1/(H*W) scale is folded into w_ref at trace time.
    s = jnp.sum(x_ref[...].astype(jnp.float32), axis=-1)                  # (nb, c_chunk)
    out_ref[...] += jnp.dot(s.astype(jnp.bfloat16), w_ref[...],
                            preferred_element_type=jnp.float32)           # (nb, OUT_PAD)


def _collapse_regressor_params(params, inv_hw):
    """Trace-time collapse of the entire post-pool regressor into one affine map.

    pred_i = pooled @ (G_i @ W2_i) + (h_i @ W2_i + b2_i), with
      G_i = Wf @ W1f_i + G_{i-1} @ W1g_i,   h_i = bf @ W1f_i + h_{i-1} @ W1g_i + b1_i,
      G_{-1} = Wg, h_{-1} = bg.
    Composition is exact (all f32); only the final W_total is cast to bf16.
    """
    wf, bf, wg, bg, w1f, w1g, b1, w2, b2 = params
    wf = wf.astype(jnp.float32)
    G = wg.astype(jnp.float32)                                   # (1280, 160)
    h = bg.astype(jnp.float32)                                   # (1, 160)
    cols, biases = [], []
    for i in range(HEAD_NUM):
        G = wf @ w1f[i] + G @ w1g[i]                             # (1280, 160)
        h = bf @ w1f[i] + h @ w1g[i] + b1[i]                     # (1, 160)
        cols.append(G @ w2[i])                                   # (1280, OUT_CHANNELS)
        biases.append(h @ w2[i] + b2[i])                         # (1, OUT_CHANNELS)
    w_total = jnp.concatenate(cols, axis=1)                      # (1280, 6)
    b_total = jnp.concatenate(biases, axis=1)                    # (1, 6)

    w_pad = jnp.zeros((IN_CHANNELS, OUT_PAD), jnp.float32)
    w_pad = w_pad.at[:, :HEAD_NUM * OUT_CHANNELS].set(w_total)
    b_pad = jnp.zeros((1, OUT_PAD), jnp.float32)
    b_pad = b_pad.at[:, :HEAD_NUM * OUT_CHANNELS].set(b_total)
    # Fold the AdaptiveAvgPool 1/(H*W) scale into the weight; cast to bf16 for native MXU.
    return (w_pad * inv_hw).astype(jnp.bfloat16), b_pad


def cascade_regressor(enc32x_nchw, params, *, batch_block=BATCH_BLOCK, c_chunk=C_CHUNK):
    """Pallas-backed CascadeArgumentRegressor.forward. Returns a list of HEAD_NUM (N, 1) arrays."""
    n, c, h, w = enc32x_nchw.shape
    assert c == IN_CHANNELS and c % c_chunk == 0
    hw = h * w
    # Free (contiguous) reshape -- the kernel pools over the flattened spatial axis directly,
    # so the only large tensor never takes an HBM round-trip through a transpose.
    x = enc32x_nchw.reshape(n, c, hw)

    w_total, b_total = _collapse_regressor_params(params, 1.0 / float(hw))

    nb = min(n, batch_block)
    # v7x has 2 TensorCores: if one tile would cover the whole batch, halve it (8-row granule)
    # so the "parallel" batch axis has >=2 grid points to shard.
    if n >= 16 and pl.cdiv(n, nb) < 2:
        nb = ((n + 15) // 16) * 8
    grid = (pl.cdiv(n, nb), c // c_chunk)   # reduction (channel) axis last

    out = pl.pallas_call(
        _regressor_kernel,
        out_shape=jax.ShapeDtypeStruct((n, OUT_PAD), jnp.float32),
        grid=grid,
        in_specs=[
            pl.BlockSpec((nb, c_chunk, hw), lambda b, k: (b, k, 0)),   # enc32x tile
            pl.BlockSpec((c_chunk, OUT_PAD), lambda b, k: (k, 0)),     # collapsed weight chunk
            pl.BlockSpec((1, OUT_PAD), lambda b, k: (0, 0)),           # bias (VMEM-resident)
        ],
        out_specs=pl.BlockSpec((nb, OUT_PAD), lambda b, k: (b, 0)),    # resident accumulator
        compiler_params=pltpu.CompilerParams(
            dimension_semantics=("parallel", "arbitrary")),
    )(x, w_total, b_total)

    return [out[:, i * OUT_CHANNELS:(i + 1) * OUT_CHANNELS] for i in range(HEAD_NUM)]


def cascade_regressor_ref(enc32x_nchw, params):
    """Pure-JAX layer-by-layer reference of the original module's math (correctness check)."""
    wf, bf, wg, bg, w1f, w1g, b1, w2, b2 = params
    pooled = jnp.mean(enc32x_nchw.astype(jnp.float32), axis=(2, 3))
    f = pooled @ wf.astype(jnp.float32) + bf
    g = pooled @ wg.astype(jnp.float32) + bg
    preds = []
    for i in range(HEAD_NUM):
        g = f @ w1f[i] + g @ w1g[i] + b1[i]
        preds.append(g @ w2[i] + b2[i])
    return preds


def init_regressor_params(key):
    """Deterministic synthetic weights with the shapes CascadeArgumentRegressor.__init__ implies.

    PyTorch nn.Linear stores weight as (out, in); here weights are generated directly in the
    transposed (in, out) layout -- semantically identical forward math.  All weights stay f32
    (matching the PyTorch checkpoint); only the trace-time-collapsed W_total is cast to bf16.
    """
    ks = jax.random.split(key, 9)
    s = 0.02
    wf = jax.random.normal(ks[0], (IN_CHANNELS, F_DIM), jnp.float32) * s
    bf = jax.random.normal(ks[1], (1, F_DIM), jnp.float32) * s
    wg = jax.random.normal(ks[2], (IN_CHANNELS, BASE_CHANNELS), jnp.float32) * s
    bg = jax.random.normal(ks[3], (1, BASE_CHANNELS), jnp.float32) * s
    # head[0]: Linear(160 + base, base); split its (in, out) weight into the f-block and g-block.
    w1f = jax.random.normal(ks[4], (HEAD_NUM, F_DIM, BASE_CHANNELS), jnp.float32) * s
    w1g = jax.random.normal(ks[5], (HEAD_NUM, BASE_CHANNELS, BASE_CHANNELS), jnp.float32) * s
    b1 = jax.random.normal(ks[6], (HEAD_NUM, 1, BASE_CHANNELS), jnp.float32) * s
    # head[1]: Linear(base, out)
    w2 = jax.random.normal(ks[7], (HEAD_NUM, BASE_CHANNELS, OUT_CHANNELS), jnp.float32) * s
    b2 = jax.random.normal(ks[8], (HEAD_NUM, 1, OUT_CHANNELS), jnp.float32) * s
    return (wf, bf, wg, bg, w1f, w1g, b1, w2, b2)


def harmonizer_forward(comp, mask, enc32x, params):
    """Harmonizer.forward, with Pallas doing the regressor hot path.

    comp: (N, 3, H, W), mask: (N, 1, H, W), enc32x: (N, 1280, h, w).
    """
    # TODO(synk): create_backbone_model() / FilterPerformer / ColorFilter are not defined in the
    # reference source; the bilinear-resize + concat preprocessing only feeds that missing
    # backbone, so it is omitted here (dead work) and enc32x is supplied directly.  The regressor
    # arguments (list of HEAD_NUM (N, 1) tensors) are returned as the output.
    del comp, mask
    return cascade_regressor(enc32x, params)


if __name__ == "__main__":
    key = jax.random.PRNGKey(0)
    k_comp, k_mask, k_enc, k_params = jax.random.split(key, 4)

    N, H, W = 2, 16, 16
    comp = jax.random.uniform(k_comp, (N, 3, H, W), jnp.float32)
    mask = jax.random.uniform(k_mask, (N, 1, H, W), jnp.float32)
    # enc32x: backbone features at 1/32 resolution, 1280 channels (MobileNet-style bottleneck).
    enc32x = jax.random.normal(k_enc, (N, IN_CHANNELS, 8, 8), jnp.float32)

    params = init_regressor_params(k_params)

    out = harmonizer_forward(comp, mask, enc32x, params)
    out = [jax.block_until_ready(o) for o in out]

    # Numerical check against a pure-JAX layer-by-layer f32 reference.  Tolerance accounts for
    # the intentional bf16 storage of the (exactly) composed W_total used on the MXU.
    ref = cascade_regressor_ref(enc32x, params)
    for o, r in zip(out, ref):
        np.testing.assert_allclose(np.asarray(o), np.asarray(r), rtol=5e-4, atol=5e-4)

    print("KERNEL_OK")
</pallas_src>

<mosaic_0001>
module attributes {stable_mosaic.version = 11 : i64} {
  func.func @_regressor_kernel(%arg0: i32, %arg1: i32, %arg2: memref<2x320x64xf32, #tpu.memory_space<vmem>>, %arg3: memref<320x128xbf16, #tpu.memory_space<vmem>>, %arg4: memref<1x128xf32, #tpu.memory_space<vmem>>, %arg5: memref<2x128xf32, #tpu.memory_space<vmem>>) attributes {dimension_semantics = [#tpu.dimension_semantics<parallel>, #tpu.dimension_semantics<arbitrary>], iteration_bounds = array<i64: 1, 4>, scalar_prefetch = 0 : i64, scratch_operands = 0 : i64, tpu.core_type = #tpu.core_type<tc>, window_params = [{transform_indices = @transform_0, window_bounds = array<i64: 2, 320, 64>}, {transform_indices = @transform_1, window_bounds = array<i64: 320, 128>}, {pipeline_mode = #tpu.pipeline_mode<synchronous>, transform_indices = @transform_2, window_bounds = array<i64: 1, 128>}, {transform_indices = @transform_3, window_bounds = array<i64: 2, 128>}]} {
    %c0_i32 = arith.constant 0 : i32
    %0 = arith.cmpi eq, %arg1, %c0_i32 : i32
    %1 = arith.extui %0 : i1 to i32
    %c0_i32_0 = arith.constant 0 : i32
    %2 = arith.cmpi ne, %1, %c0_i32_0 : i32
    scf.if %2 {
      %c0_10 = arith.constant 0 : index
      %c0_11 = arith.constant 0 : index
      %11 = vector.load %arg4[%c0_10, %c0_11] : memref<1x128xf32, #tpu.memory_space<vmem>>, vector<1x128xf32>
      %12 = vector.shape_cast %11 : vector<1x128xf32> to vector<1x128xf32>
      %13 = vector.broadcast %12 : vector<1x128xf32> to vector<2x128xf32>
      %c0_12 = arith.constant 0 : index
      %c0_13 = arith.constant 0 : index
      %14 = vector.load %arg5[%c0_12, %c0_13] : memref<2x128xf32, #tpu.memory_space<vmem>>, vector<2x128xf32>
      tpu.vector_store %arg5[%c0_12, %c0_13], %13 {strides = array<i32>} : memref<2x128xf32, #tpu.memory_space<vmem>>, vector<2x128xf32>,
    } else {
    }
    %c0 = arith.constant 0 : index
    %c0_1 = arith.constant 0 : index
    %c0_2 = arith.constant 0 : index
    %3 = vector.load %arg2[%c0, %c0_1, %c0_2] : memref<2x320x64xf32, #tpu.memory_space<vmem>>, vector<2x320x64xf32>
    %cst = arith.constant dense<0.000000e+00> : vector<2x320xf32>
    %4 = vector.multi_reduction <add>, %3, %cst [2] : vector<2x320x64xf32> to vector<2x320xf32>
    %c0_3 = arith.constant 0 : index
    %c0_4 = arith.constant 0 : index
    %5 = vector.load %arg5[%c0_3, %c0_4] : memref<2x128xf32, #tpu.memory_space<vmem>>, vector<2x128xf32>
    %6 = arith.truncf %4 : vector<2x320xf32> to vector<2x320xbf16>
    %c0_5 = arith.constant 0 : index
    %c0_6 = arith.constant 0 : index
    %7 = vector.load %arg3[%c0_5, %c0_6] : memref<320x128xbf16, #tpu.memory_space<vmem>>, vector<320x128xbf16>
    %cst_7 = arith.constant dense<0.000000e+00> : vector<2x128xf32>
    %8 = tpu.matmul %6, %7, %cst_7 {dimension_numbers = #tpu.dot_dimension_numbers<[1], [0], [0], [1], [0, 0, 1, 1], [], []>} : vector<2x320xbf16>, vector<320x128xbf16>, vector<2x128xf32> -> vector<2x128xf32>
    %9 = arith.addf %5, %8 : vector<2x128xf32>
    %c0_8 = arith.constant 0 : index
    %c0_9 = arith.constant 0 : index
    %10 = vector.load %arg5[%c0_8, %c0_9] : memref<2x128xf32, #tpu.memory_space<vmem>>, vector<2x128xf32>
    tpu.vector_store %arg5[%c0_8, %c0_9], %9 {strides = array<i32>} : memref<2x128xf32, #tpu.memory_space<vmem>>, vector<2x128xf32>,
    return
  }
  func.func @transform_0(%arg0: i32, %arg1: i32) -> (i32, i32, i32) {
    %c0_i32 = arith.constant 0 : i32
    %c0_i32_0 = arith.constant 0 : i32
    return %arg0, %arg1, %c0_i32 : i32, i32, i32
  }
  func.func @transform_1(%arg0: i32, %arg1: i32) -> (i32, i32) {
    %c0_i32 = arith.constant 0 : i32
    %c0_i32_0 = arith.constant 0 : i32
    return %arg1, %c0_i32 : i32, i32
  }
  func.func @transform_2(%arg0: i32, %arg1: i32) -> (i32, i32) {
    %c0_i32 = arith.constant 0 : i32
    %c0_i32_0 = arith.constant 0 : i32
    %c0_i32_1 = arith.constant 0 : i32
    return %c0_i32, %c0_i32_0 : i32, i32
  }
  func.func @transform_3(%arg0: i32, %arg1: i32) -> (i32, i32) {
    %c0_i32 = arith.constant 0 : i32
    %c0_i32_0 = arith.constant 0 : i32
    return %arg0, %c0_i32 : i32, i32
  }
}

</mosaic_0001>

<llo_original>
// kernel: tpu_custom_call.1
$region0: #{tpu_custom_call.1}
  #allocation0 [shape = 'u32[]', space=smem, size = 0x4, offset = 0x4, fixed_abs, tag = 'smem constant byte address 0x4 - core index']
  #allocation1 [shape = 'u32[144,128]{1,0:T(1,128)}', space=vmem, size = 0x12000, scoped, tag = 'internal scratch']
  %s0 = inlined_call_operand.vmem [shape: f32[2,1280,64], index: 0, kind: input, shape index: {}]
  %s1 = inlined_call_operand.vmem [shape: bf16[1280,128], index: 1, kind: input, shape index: {}]
  %s2 = inlined_call_operand.vmem [shape: f32[1,128], index: 2, kind: input, shape index: {}]
  %s3 = inlined_call_operand.hbm [shape: f32[2,128], index: 3, kind: output, shape index: {}]
  %s4 = sld [smem:[#allocation0]]
  $region87: #{tpu_custom_call.1} parent=0
    _
  %s6 = ssub.s32 1, %s4
  %s7 = scalar_select 0, %s6, %s4
  $region1: #{tpu_custom_call.1} parent=0
    #allocation2 [shape = 'u8[655360]{0}', space=vmem, size = 0xa0000, scoped, tag = 'input window, operand 0']
    #allocation3 [shape = 'u8[1024]{0}', space=vmem, size = 0x400, scoped, tag = 'output window, operand 0, single buffered']
    #allocation4 [shape = 's32[2]{0}', space=sflag, size = 0x8, scoped, tag = 'scoped memory for tpu_custom_call.1']
    %8 = vsyncpa [#allocation4], 0
    loop: start=0, step=1, limit=6
    $region2: #{tpu_custom_call.1} parent=1 // loop_pre_header
      _
    $region3: #{tpu_custom_call.1} parent=1 // loop_header
      %s10 = sphi 0, %s14
      %p11 = scmp.ge.s32.totalorder %s10, 6
      %s17 = sphi 0, %s29
      %s18 = sphi 0, %s25
      %s19 = sphi 0, %s17
      %s20 = sphi 0, %s18
      %s21 = sphi 0, %s19
      %s22 = sphi 0, %s20
      %s34 = sphi 0, %s36
      %s37 = sphi 0, %s34
      %s38 = sphi 0, %s37
      %s54 = sphi 0, %s38
      %s60 = sphi 0, %s62
      %s63 = sphi 0, %s60
      %s64 = sphi 0, %s63
      %s80 = sphi 0, %s64
      %s84 = sphi 0, %s84
      %s86 = sphi 0, %s84
      %s87 = sphi 0, %s86
      %s101 = sphi 0, %s87
      %s107 = sphi 0, %s109
      %s110 = sphi 0, %s107
      %s111 = sphi 0, %s110
      %s127 = sphi 0, %s111
    $region4: #{tpu_custom_call.1} parent=1 // loop_header_branch
      %13 = sbr.rel (%p11) target = $region8
    $region5: #{tpu_custom_call.1} parent=1 // loop_body
      %s15 = ssub.s32 %s10, 1
      %s16 = ssub.s32 %s10, 2
      %s23 = sadd.s32 1, %s18
      %p24 = scmp.ge.s32.totalorder %s23, 4
      %s25 = scalar_select %p24, 0, %s23
      %s26 = sadd.s32 1, %s17
      %s27 = scalar_select %p24, %s26, %s17
      %p28 = scmp.ge.s32.totalorder %s27, 1
      %s29 = scalar_select %p28, 0, %s27
      %s30 = ssub.s32 %s17, %s29
      %s31 = ssub.s32 %s18, %s25
      %s32 = sor.u32 %s30, %s31
      %p33 = scmp.eq.s32.totalorder %s32, 0
      %s35 = sadd.s32 %s34, 1
      %s36 = scalar_select %p33, %s34, %s35
      %p39 = pneg %p33
      %p40 = scmp.eq.s32.totalorder %s10, 3
      %p41 = por %p39, %p40
      %p42 = scmp.ne.s32.totalorder %s34, %s37
      %p43 = scmp.eq.s32.totalorder %s10, 0
      %p44 = por %p42, %p43
      %p45 = scmp.ne.s32.totalorder %s34, %s37
      %p46 = scmp.eq.s32.totalorder %s15, 3
      %p47 = por %p45, %p46
      %p48 = scmp.ne.s32.totalorder %s37, %s38
      %p49 = scmp.eq.s32.totalorder %s15, 0
      %p50 = por %p48, %p49
      %p51 = scmp.ne.s32.totalorder %s37, %s38
      %p52 = scmp.eq.s32.totalorder %s16, 3
      %p53 = por %p51, %p52
      %p55 = scmp.ne.s32.totalorder %s38, %s54
      %p56 = scmp.eq.s32.totalorder %s16, 0
      %p57 = por %p55, %p56
      %s58 = ssub.s32 %s18, %s25
      %p59 = scmp.eq.s32.totalorder %s58, 0
      %s61 = sadd.s32 %s60, 1
      %s62 = scalar_select %p59, %s60, %s61
      %p65 = pneg %p59
      %p66 = scmp.eq.s32.totalorder %s10, 3
      %p67 = por %p65, %p66
      %p68 = scmp.ne.s32.totalorder %s60, %s63
      %p69 = scmp.eq.s32.totalorder %s10, 0
      %p70 = por %p68, %p69
      %p71 = scmp.ne.s32.totalorder %s60, %s63
      %p72 = scmp.eq.s32.totalorder %s15, 3
      %p73 = por %p71, %p72
      %p74 = scmp.ne.s32.totalorder %s63, %s64
      %p75 = scmp.eq.s32.totalorder %s15, 0
      %p76 = por %p74, %p75
      %p77 = scmp.ne.s32.totalorder %s63, %s64
      %p78 = scmp.eq.s32.totalorder %s16, 3
      %p79 = por %p77, %p78
      %p81 = scmp.ne.s32.totalorder %s64, %s80
      %p82 = scmp.eq.s32.totalorder %s16, 0
      %p83 = por %p81, %p82
      %s85 = sadd.s32 %s84, 1
      %p88 = scmp.eq.s32.totalorder %s10, 3
      %p89 = scmp.ne.s32.totalorder %s84, %s86
      %p90 = scmp.eq.s32.totalorder %s10, 0
      %p91 = por %p89, %p90
      %p92 = scmp.ne.s32.totalorder %s84, %s86
      %p93 = scmp.eq.s32.totalorder %s15, 3
      %p94 = por %p92, %p93
      %p95 = scmp.ne.s32.totalorder %s86, %s87
      %p96 = scmp.eq.s32.totalorder %s15, 0
      %p97 = por %p95, %p96
      %p98 = scmp.ne.s32.totalorder %s86, %s87
      %p99 = scmp.eq.s32.totalorder %s16, 3
      %p100 = por %p98, %p99
      %p102 = scmp.ne.s32.totalorder %s87, %s101
      %p103 = scmp.eq.s32.totalorder %s16, 0
      %p104 = por %p102, %p103
      %s105 = ssub.s32 %s17, %s29
      %p106 = scmp.eq.s32.totalorder %s105, 0
      %s108 = sadd.s32 %s107, 1
      %s109 = scalar_select %p106, %s107, %s108
      %p112 = pneg %p106
      %p113 = scmp.eq.s32.totalorder %s10, 3
      %p114 = por %p112, %p113
      %p115 = scmp.ne.s32.totalorder %s107, %s110
      %p116 = scmp.eq.s32.totalorder %s10, 0
      %p117 = por %p115, %p116
      %p118 = scmp.ne.s32.totalorder %s107, %s110
      %p119 = scmp.eq.s32.totalorder %s15, 3
      %p120 = por %p118, %p119
      %p121 = scmp.ne.s32.totalorder %s110, %s111
      %p122 = scmp.eq.s32.totalorder %s15, 0
      %p123 = por %p121, %p122
      %p124 = scmp.ne.s32.totalorder %s110, %s111
      %p125 = scmp.eq.s32.totalorder %s16, 3
      %p126 = por %p124, %p125
      %p128 = scmp.ne.s32.totalorder %s111, %s127
      %p129 = scmp.eq.s32.totalorder %s16, 0
      %p130 = por %p128, %p129
      %p131 = scmp.le.s32.totalorder 1, %s10
      %p132 = scmp.lt.s32.totalorder %s10, 5
      %p133 = pnand %p131, %p132
      %p134 = pneg %p133
      // Predicated region
      $region9: #{tpu_custom_call.1} parent=5 // pred_check
        _
      $region10: #{tpu_custom_call.1} parent=5 // pred_check_branch
        %136 = sbr.rel (%p133) target = $region12
      $region11: #{tpu_custom_call.1} parent=5 // pred_region
        %s137 = ssub.s32 %s10, 1
        // Predicated region
        $region13: #{tpu_custom_call.1} parent=11 // pred_check
          %p138 = pneg %p97
        $region14: #{tpu_custom_call.1} parent=11 // pred_check_branch
          %140 = sbr.rel (%p138) target = $region16
        $region15: #{tpu_custom_call.1} parent=11 // pred_region
          _
        $region16: #{tpu_custom_call.1} parent=11 // pred_fallthru
          _
      $region12: #{tpu_custom_call.1} parent=5 // pred_fallthru
        _
      %p141 = scmp.lt.s32.totalorder %s10, 4
      // Predicated region
      $region17: #{tpu_custom_call.1} parent=5 // pred_check
        %p142 = pneg %p141
      $region18: #{tpu_custom_call.1} parent=5 // pred_check_branch
        %144 = sbr.rel (%p142) target = $region20
      $region19: #{tpu_custom_call.1} parent=5 // pred_region
        // Predicated region
        $region21: #{tpu_custom_call.1} parent=19 // pred_check
          %p145 = pneg %p44
        $region22: #{tpu_custom_call.1} parent=19 // pred_check_branch
          %147 = sbr.rel (%p145) target = $region24
        $region23: #{tpu_custom_call.1} parent=19 // pred_region
          %s148 = sand.u32 %s34, 1
          %s149 = sand.u32 %s34, 1
          %s150 = smul.addr %s149, 640
          %s151 = scalar_lea.vmem [#allocation2], %s150
          %s152 = smul.u32 2, %s17
          %s153 = smul.u32 40, %s18
          %s154 = smul.addr %s152, 160
          %s155 = sadd.s32 %s153, %s154
          %s156 = smul.addr %s155, 8
          %s157 = scalar_lea.vmem %s0, %s156
          // Predicated region
          $region25: #{tpu_custom_call.1} parent=23 // pred_check
            _
          $region26: #{tpu_custom_call.1} parent=23 // pred_check_branch
            %159 = sbr.rel (0) target = $region28
          $region27: #{tpu_custom_call.1} parent=23 // pred_region
            // Predicated region
            $region29: #{tpu_custom_call.1} parent=27 // pred_check
              _
            $region30: #{tpu_custom_call.1} parent=27 // pred_check_branch
              %161 = sbr.rel (0) target = $region32
            $region31: #{tpu_custom_call.1} parent=27 // pred_region
              // Predicated region
              $region44: #{tpu_custom_call.1} parent=31 // pred_check
                _
              $region45: #{tpu_custom_call.1} parent=31 // pred_check_branch
                %334 = sbr.rel (0) target = $region47
              $region46: #{tpu_custom_call.1} parent=31 // pred_region
                loop: start=0, step=1, limit=1
                $region48: #{tpu_custom_call.1} parent=46 // loop_pre_header
                  _
                $region49: #{tpu_custom_call.1} parent=46 // loop_header
                  %s336 = sphi 0, %s340
                  %p337 = scmp.ge.s32.totalorder %s336, 1
                  %s341 = sphi %s157, %s157
                  %s342 = sphi %s151, %s151
                $region50: #{tpu_custom_call.1} parent=46 // loop_header_branch
                  %339 = sbr.rel (%p337) target = $region54
                $region51: #{tpu_custom_call.1} parent=46 // loop_body
                  %v343 = vld [vmem:[%s341] sm:$0xff]
                  %344 = vst [vmem:[%s342] sm:$0xff] %v343
                  %v345 = vld [vmem:[%s341 + $0x8] sm:$0xff]
                  %346 = vst [vmem:[%s342 + $0x8] sm:$0xff] %v345
                  %v347 = vld [vmem:[%s341 + $0x10] sm:$0xff]
                  %348 = vst [vmem:[%s342 + $0x10] sm:$0xff] %v347
                  %v349 = vld [vmem:[%s341 + $0x18] sm:$0xff]
                  %350 = vst [vmem:[%s342 + $0x18] sm:$0xff] %v349
                  %v351 = vld [vmem:[%s341 + $0x20] sm:$0xff]
                  %352 = vst [vmem:[%s342 + $0x20] sm:$0xff] %v351
                  %v353 = vld [vmem:[%s341 + $0x28] sm:$0xff]
                  %354 = vst [vmem:[%s342 + $0x28] sm:$0xff] %v353
                  %v355 = vld [vmem:[%s341 + $0x30] sm:$0xff]
                  %356 = vst [vmem:[%s342 + $0x30] sm:$0xff] %v355
                  %v357 = vld [vmem:[%s341 + $0x38] sm:$0xff]
                  %358 = vst [vmem:[%s342 + $0x38] sm:$0xff] %v357
                  %v359 = vld [vmem:[%s341 + $0x40] sm:$0xff]
                  %360 = vst [vmem:[%s342 + $0x40] sm:$0xff] %v359
                  %v361 = vld [vmem:[%s341 + $0x48] sm:$0xff]
                  %362 = vst [vmem:[%s342 + $0x48] sm:$0xff] %v361
                  %v363 = vld [vmem:[%s341 + $0x50] sm:$0xff]
                  %364 = vst [vmem:[%s342 + $0x50] sm:$0xff] %v363
                  %v365 = vld [vmem:[%s341 + $0x58] sm:$0xff]
                  %366 = vst [vmem:[%s342 + $0x58] sm:$0xff] %v365
                  %v367 = vld [vmem:[%s341 + $0x60] sm:$0xff]
                  %368 = vst [vmem:[%s342 + $0x60] sm:$0xff] %v367
                  %v369 = vld [vmem:[%s341 + $0x68] sm:$0xff]
                  %370 = vst [vmem:[%s342 + $0x68] sm:$0xff] %v369
                  %v371 = vld [vmem:[%s341 + $0x70] sm:$0xff]
                  %372 = vst [vmem:[%s342 + $0x70] sm:$0xff] %v371
                  %v373 = vld [vmem:[%s341 + $0x78] sm:$0xff]
                  %374 = vst [vmem:[%s342 + $0x78] sm:$0xff] %v373
                  %v375 = vld [vmem:[%s341 + $0x80] sm:$0xff]
                  %376 = vst [vmem:[%s342 + $0x80] sm:$0xff] %v375
                  %v377 = vld [vmem:[%s341 + $0x88] sm:$0xff]
                  %378 = vst [vmem:[%s342 + $0x88] sm:$0xff] %v377
                  %v379 = vld [vmem:[%s341 + $0x90] sm:$0xff]
                  %380 = vst [vmem:[%s342 + $0x90] sm:$0xff] %v379
                  %v381 = vld [vmem:[%s341 + $0x98] sm:$0xff]
                  %382 = vst [vmem:[%s342 + $0x98] sm:$0xff] %v381
                  %v383 = vld [vmem:[%s341 + $0xa0] sm:$0xff]
                  %384 = vst [vmem:[%s342 + $0xa0] sm:$0xff] %v383
                  %v385 = vld [vmem:[%s341 + $0xa8] sm:$0xff]
                  %386 = vst [vmem:[%s342 + $0xa8] sm:$0xff] %v385
                  %v387 = vld [vmem:[%s341 + $0xb0] sm:$0xff]
                  %388 = vst [vmem:[%s342 + $0xb0] sm:$0xff] %v387
                  %v389 = vld [vmem:[%s341 + $0xb8] sm:$0xff]
                  %390 = vst [vmem:[%s342 + $0xb8] sm:$0xff] %v389
                  %v391 = vld [vmem:[%s341 + $0xc0] sm:$0xff]
                  %392 = vst [vmem:[%s342 + $0xc0] sm:$0xff] %v391
                  %v393 = vld [vmem:[%s341 + $0xc8] sm:$0xff]
                  %394 = vst [vmem:[%s342 + $0xc8] sm:$0xff] %v393
                  %v395 = vld [vmem:[%s341 + $0xd0] sm:$0xff]
                  %396 = vst [vmem:[%s342 + $0xd0] sm:$0xff] %v395
                  %v397 = vld [vmem:[%s341 + $0xd8] sm:$0xff]
                  %398 = vst [vmem:[%s342 + $0xd8] sm:$0xff] %v397
                  %v399 = vld [vmem:[%s341 + $0xe0] sm:$0xff]
                  %400 = vst [vmem:[%s342 + $0xe0] sm:$0xff] %v399
                  %v401 = vld [vmem:[%s341 + $0xe8] sm:$0xff]
                  %402 = vst [vmem:[%s342 + $0xe8] sm:$0xff] %v401
                  %v403 = vld [vmem:[%s341 + $0xf0] sm:$0xff]
                  %404 = vst [vmem:[%s342 + $0xf0] sm:$0xff] %v403
                  %v405 = vld [vmem:[%s341 + $0xf8] sm:$0xff]
                  %406 = vst [vmem:[%s342 + $0xf8] sm:$0xff] %v405
                  %v407 = vld [vmem:[%s341 + $0x100] sm:$0xff]
                  %408 = vst [vmem:[%s342 + $0x100] sm:$0xff] %v407
                  %v409 = vld [vmem:[%s341 + $0x108] sm:$0xff]
                  %410 = vst [vmem:[%s342 + $0x108] sm:$0xff] %v409
                  %v411 = vld [vmem:[%s341 + $0x110] sm:$0xff]
                  %412 = vst [vmem:[%s342 + $0x110] sm:$0xff] %v411
                  %v413 = vld [vmem:[%s341 + $0x118] sm:$0xff]
                  %414 = vst [vmem:[%s342 + $0x118] sm:$0xff] %v413
                  %v415 = vld [vmem:[%s341 + $0x120] sm:$0xff]
                  %416 = vst [vmem:[%s342 + $0x120] sm:$0xff] %v415
                  %v417 = vld [vmem:[%s341 + $0x128] sm:$0xff]
                  %418 = vst [vmem:[%s342 + $0x128] sm:$0xff] %v417
                  %v419 = vld [vmem:[%s341 + $0x130] sm:$0xff]
                  %420 = vst [vmem:[%s342 + $0x130] sm:$0xff] %v419
                  %v421 = vld [vmem:[%s341 + $0x138] sm:$0xff]
                  %422 = vst [vmem:[%s342 + $0x138] sm:$0xff] %v421
                  %v423 = vld [vmem:[%s341 + $0x500] sm:$0xff]
                  %424 = vst [vmem:[%s342 + $0x140] sm:$0xff] %v423
                  %v425 = vld [vmem:[%s341 + $0x508] sm:$0xff]
                  %426 = vst [vmem:[%s342 + $0x148] sm:$0xff] %v425
                  %v427 = vld [vmem:[%s341 + $0x510] sm:$0xff]
                  %428 = vst [vmem:[%s342 + $0x150] sm:$0xff] %v427
                  %v429 = vld [vmem:[%s341 + $0x518] sm:$0xff]
                  %430 = vst [vmem:[%s342 + $0x158] sm:$0xff] %v429
                  %v431 = vld [vmem:[%s341 + $0x520] sm:$0xff]
                  %432 = vst [vmem:[%s342 + $0x160] sm:$0xff] %v431
                  %v433 = vld [vmem:[%s341 + $0x528] sm:$0xff]
                  %434 = vst [vmem:[%s342 + $0x168] sm:$0xff] %v433
                  %v435 = vld [vmem:[%s341 + $0x530] sm:$0xff]
                  %436 = vst [vmem:[%s342 + $0x170] sm:$0xff] %v435
                  %v437 = vld [vmem:[%s341 + $0x538] sm:$0xff]
                  %438 = vst [vmem:[%s342 + $0x178] sm:$0xff] %v437
                  %v439 = vld [vmem:[%s341 + $0x540] sm:$0xff]
                  %440 = vst [vmem:[%s342 + $0x180] sm:$0xff] %v439
                  %v441 = vld [vmem:[%s341 + $0x548] sm:$0xff]
                  %442 = vst [vmem:[%s342 + $0x188] sm:$0xff] %v441
                  %v443 = vld [vmem:[%s341 + $0x550] sm:$0xff]
                  %444 = vst [vmem:[%s342 + $0x190] sm:$0xff] %v443
                  %v445 = vld [vmem:[%s341 + $0x558] sm:$0xff]
                  %446 = vst [vmem:[%s342 + $0x198] sm:$0xff] %v445
                  %v447 = vld [vmem:[%s341 + $0x560] sm:$0xff]
                  %448 = vst [vmem:[%s342 + $0x1a0] sm:$0xff] %v447
                  %v449 = vld [vmem:[%s341 + $0x568] sm:$0xff]
                  %450 = vst [vmem:[%s342 + $0x1a8] sm:$0xff] %v449
                  %v451 = vld [vmem:[%s341 + $0x570] sm:$0xff]
                  %452 = vst [vmem:[%s342 + $0x1b0] sm:$0xff] %v451
                  %v453 = vld [vmem:[%s341 + $0x578] sm:$0xff]
                  %454 = vst [vmem:[%s342 + $0x1b8] sm:$0xff] %v453
                  %v455 = vld [vmem:[%s341 + $0x580] sm:$0xff]
                  %456 = vst [vmem:[%s342 + $0x1c0] sm:$0xff] %v455
                  %v457 = vld [vmem:[%s341 + $0x588] sm:$0xff]
                  %458 = vst [vmem:[%s342 + $0x1c8] sm:$0xff] %v457
                  %v459 = vld [vmem:[%s341 + $0x590] sm:$0xff]
                  %460 = vst [vmem:[%s342 + $0x1d0] sm:$0xff] %v459
                  %v461 = vld [vmem:[%s341 + $0x598] sm:$0xff]
                  %462 = vst [vmem:[%s342 + $0x1d8] sm:$0xff] %v461
                  %v463 = vld [vmem:[%s341 + $0x5a0] sm:$0xff]
                  %464 = vst [vmem:[%s342 + $0x1e0] sm:$0xff] %v463
                  %v465 = vld [vmem:[%s341 + $0x5a8] sm:$0xff]
                  %466 = vst [vmem:[%s342 + $0x1e8] sm:$0xff] %v465
                  %v467 = vld [vmem:[%s341 + $0x5b0] sm:$0xff]
                  %468 = vst [vmem:[%s342 + $0x1f0] sm:$0xff] %v467
                  %v469 = vld [vmem:[%s341 + $0x5b8] sm:$0xff]
                  %470 = vst [vmem:[%s342 + $0x1f8] sm:$0xff] %v469
                  %v471 = vld [vmem:[%s341 + $0x5c0] sm:$0xff]
                  %472 = vst [vmem:[%s342 + $0x200] sm:$0xff] %v471
                  %v473 = vld [vmem:[%s341 + $0x5c8] sm:$0xff]
                  %474 = vst [vmem:[%s342 + $0x208] sm:$0xff] %v473
                  %v475 = vld [vmem:[%s341 + $0x5d0] sm:$0xff]
                  %476 = vst [vmem:[%s342 + $0x210] sm:$0xff] %v475
                  %v477 = vld [vmem:[%s341 + $0x5d8] sm:$0xff]
                  %478 = vst [vmem:[%s342 + $0x218] sm:$0xff] %v477
                  %v479 = vld [vmem:[%s341 + $0x5e0] sm:$0xff]
                  %480 = vst [vmem:[%s342 + $0x220] sm:$0xff] %v479
                  %v481 = vld [vmem:[%s341 + $0x5e8] sm:$0xff]
                  %482 = vst [vmem:[%s342 + $0x228] sm:$0xff] %v481
                  %v483 = vld [vmem:[%s341 + $0x5f0] sm:$0xff]
                  %484 = vst [vmem:[%s342 + $0x230] sm:$0xff] %v483
                  %v485 = vld [vmem:[%s341 + $0x5f8] sm:$0xff]
                  %486 = vst [vmem:[%s342 + $0x238] sm:$0xff] %v485
                  %v487 = vld [vmem:[%s341 + $0x600] sm:$0xff]
                  %488 = vst [vmem:[%s342 + $0x240] sm:$0xff] %v487
                  %v489 = vld [vmem:[%s341 + $0x608] sm:$0xff]
                  %490 = vst [vmem:[%s342 + $0x248] sm:$0xff] %v489
                  %v491 = vld [vmem:[%s341 + $0x610] sm:$0xff]
                  %492 = vst [vmem:[%s342 + $0x250] sm:$0xff] %v491
                  %v493 = vld [vmem:[%s341 + $0x618] sm:$0xff]
                  %494 = vst [vmem:[%s342 + $0x258] sm:$0xff] %v493
                  %v495 = vld [vmem:[%s341 + $0x620] sm:$0xff]
                  %496 = vst [vmem:[%s342 + $0x260] sm:$0xff] %v495
                  %v497 = vld [vmem:[%s341 + $0x628] sm:$0xff]
                  %498 = vst [vmem:[%s342 + $0x268] sm:$0xff] %v497
                  %v499 = vld [vmem:[%s341 + $0x630] sm:$0xff]
                  %500 = vst [vmem:[%s342 + $0x270] sm:$0xff] %v499
                  %v501 = vld [vmem:[%s341 + $0x638] sm:$0xff]
                  %502 = vst [vmem:[%s342 + $0x278] sm:$0xff] %v501
                $region52: #{tpu_custom_call.1} parent=46 // loop_footer
                  %s340 = sadd.s32 1, %s336
                $region53: #{tpu_custom_call.1} parent=46 // loop_footer_branch
                  %335 = sbr.rel target = $region49
                $region54: #{tpu_custom_call.1} parent=46 // loop_exit
                  _
              $region47: #{tpu_custom_call.1} parent=31 // pred_fallthru
                _
              // Predicated region
              $region55: #{tpu_custom_call.1} parent=31 // pred_check
                _
              $region56: #{tpu_custom_call.1} parent=31 // pred_check_branch
                %504 = sbr.rel target = $region58
              $region57: #{tpu_custom_call.1} parent=31 // pred_region
                _
              $region58: #{tpu_custom_call.1} parent=31 // pred_fallthru
                _
            $region32: #{tpu_custom_call.1} parent=27 // pred_fallthru
              _
            // Predicated region
            $region33: #{tpu_custom_call.1} parent=27 // pred_check
              _
            $region34: #{tpu_custom_call.1} parent=27 // pred_check_branch
              %163 = sbr.rel target = $region36
            $region35: #{tpu_custom_call.1} parent=27 // pred_region
              loop: start=0, step=1, limit=1
              $region37: #{tpu_custom_call.1} parent=35 // loop_pre_header
                _
              $region38: #{tpu_custom_call.1} parent=35 // loop_header
                %s166 = sphi 0, %s170
                %p167 = scmp.ge.s32.totalorder %s166, 1
                %s171 = sphi %s157, %s157
                %s172 = sphi %s151, %s151
              $region39: #{tpu_custom_call.1} parent=35 // loop_header_branch
                %169 = sbr.rel (%p167) target = $region43
              $region40: #{tpu_custom_call.1} parent=35 // loop_body
                %v173 = vld [vmem:[%s171] sm:$0xff]
                %174 = vst [vmem:[%s172] sm:$0xff] %v173
                %v175 = vld [vmem:[%s171 + $0x8] sm:$0xff]
                %176 = vst [vmem:[%s172 + $0x8] sm:$0xff] %v175
                %v177 = vld [vmem:[%s171 + $0x10] sm:$0xff]
                %178 = vst [vmem:[%s172 + $0x10] sm:$0xff] %v177
                %v179 = vld [vmem:[%s171 + $0x18] sm:$0xff]
                %180 = vst [vmem:[%s172 + $0x18] sm:$0xff] %v179
                %v181 = vld [vmem:[%s171 + $0x20] sm:$0xff]
                %182 = vst [vmem:[%s172 + $0x20] sm:$0xff] %v181
                %v183 = vld [vmem:[%s171 + $0x28] sm:$0xff]
                %184 = vst [vmem:[%s172 + $0x28] sm:$0xff] %v183
                %v185 = vld [vmem:[%s171 + $0x30] sm:$0xff]
                %186 = vst [vmem:[%s172 + $0x30] sm:$0xff] %v185
                %v187 = vld [vmem:[%s171 + $0x38] sm:$0xff]
                %188 = vst [vmem:[%s172 + $0x38] sm:$0xff] %v187
                %v189 = vld [vmem:[%s171 + $0x40] sm:$0xff]
                %190 = vst [vmem:[%s172 + $0x40] sm:$0xff] %v189
                %v191 = vld [vmem:[%s171 + $0x48] sm:$0xff]
                %192 = vst [vmem:[%s172 + $0x48] sm:$0xff] %v191
                %v193 = vld [vmem:[%s171 + $0x50] sm:$0xff]
                %194 = vst [vmem:[%s172 + $0x50] sm:$0xff] %v193
                %v195 = vld [vmem:[%s171 + $0x58] sm:$0xff]
                %196 = vst [vmem:[%s172 + $0x58] sm:$0xff] %v195
                %v197 = vld [vmem:[%s171 + $0x60] sm:$0xff]
                %198 = vst [vmem:[%s172 + $0x60] sm:$0xff] %v197
                %v199 = vld [vmem:[%s171 + $0x68] sm:$0xff]
                %200 = vst [vmem:[%s172 + $0x68] sm:$0xff] %v199
                %v201 = vld [vmem:[%s171 + $0x70] sm:$0xff]
                %202 = vst [vmem:[%s172 + $0x70] sm:$0xff] %v201
                %v203 = vld [vmem:[%s171 + $0x78] sm:$0xff]
                %204 = vst [vmem:[%s172 + $0x78] sm:$0xff] %v203
                %v205 = vld [vmem:[%s171 + $0x80] sm:$0xff]
                %206 = vst [vmem:[%s172 + $0x80] sm:$0xff] %v205
                %v207 = vld [vmem:[%s171 + $0x88] sm:$0xff]
                %208 = vst [vmem:[%s172 + $0x88] sm:$0xff] %v207
                %v209 = vld [vmem:[%s171 + $0x90] sm:$0xff]
                %210 = vst [vmem:[%s172 + $0x90] sm:$0xff] %v209
                %v211 = vld [vmem:[%s171 + $0x98] sm:$0xff]
                %212 = vst [vmem:[%s172 + $0x98] sm:$0xff] %v211
                %v213 = vld [vmem:[%s171 + $0xa0] sm:$0xff]
                %214 = vst [vmem:[%s172 + $0xa0] sm:$0xff] %v213
                %v215 = vld [vmem:[%s171 + $0xa8] sm:$0xff]
                %216 = vst [vmem:[%s172 + $0xa8] sm:$0xff] %v215
                %v217 = vld [vmem:[%s171 + $0xb0] sm:$0xff]
                %218 = vst [vmem:[%s172 + $0xb0] sm:$0xff] %v217
                %v219 = vld [vmem:[%s171 + $0xb8] sm:$0xff]
                %220 = vst [vmem:[%s172 + $0xb8] sm:$0xff] %v219
                %v221 = vld [vmem:[%s171 + $0xc0] sm:$0xff]
                %222 = vst [vmem:[%s172 + $0xc0] sm:$0xff] %v221
                %v223 = vld [vmem:[%s171 + $0xc8] sm:$0xff]
                %224 = vst [vmem:[%s172 + $0xc8] sm:$0xff] %v223
                %v225 = vld [vmem:[%s171 + $0xd0] sm:$0xff]
                %226 = vst [vmem:[%s172 + $0xd0] sm:$0xff] %v225
                %v227 = vld [vmem:[%s171 + $0xd8] sm:$0xff]
                %228 = vst [vmem:[%s172 + $0xd8] sm:$0xff] %v227
                %v229 = vld [vmem:[%s171 + $0xe0] sm:$0xff]
                %230 = vst [vmem:[%s172 + $0xe0] sm:$0xff] %v229
                %v231 = vld [vmem:[%s171 + $0xe8] sm:$0xff]
                %232 = vst [vmem:[%s172 + $0xe8] sm:$0xff] %v231
                %v233 = vld [vmem:[%s171 + $0xf0] sm:$0xff]
                %234 = vst [vmem:[%s172 + $0xf0] sm:$0xff] %v233
                %v235 = vld [vmem:[%s171 + $0xf8] sm:$0xff]
                %236 = vst [vmem:[%s172 + $0xf8] sm:$0xff] %v235
                %v237 = vld [vmem:[%s171 + $0x100] sm:$0xff]
                %238 = vst [vmem:[%s172 + $0x100] sm:$0xff] %v237
                %v239 = vld [vmem:[%s171 + $0x108] sm:$0xff]
                %240 = vst [vmem:[%s172 + $0x108] sm:$0xff] %v239
                %v241 = vld [vmem:[%s171 + $0x110] sm:$0xff]
                %242 = vst [vmem:[%s172 + $0x110] sm:$0xff] %v241
                %v243 = vld [vmem:[%s171 + $0x118] sm:$0xff]
                %244 = vst [vmem:[%s172 + $0x118] sm:$0xff] %v243
                %v245 = vld [vmem:[%s171 + $0x120] sm:$0xff]
                %246 = vst [vmem:[%s172 + $0x120] sm:$0xff] %v245
                %v247 = vld [vmem:[%s171 + $0x128] sm:$0xff]
                %248 = vst [vmem:[%s172 + $0x128] sm:$0xff] %v247
                %v249 = vld [vmem:[%s171 + $0x130] sm:$0xff]
                %250 = vst [vmem:[%s172 + $0x130] sm:$0xff] %v249
                %v251 = vld [vmem:[%s171 + $0x138] sm:$0xff]
                %252 = vst [vmem:[%s172 + $0x138] sm:$0xff] %v251
                %v253 = vld [vmem:[%s171 + $0x500] sm:$0xff]
                %254 = vst [vmem:[%s172 + $0x140] sm:$0xff] %v253
                %v255 = vld [vmem:[%s171 + $0x508] sm:$0xff]
                %256 = vst [vmem:[%s172 + $0x148] sm:$0xff] %v255
                %v257 = vld [vmem:[%s171 + $0x510] sm:$0xff]
                %258 = vst [vmem:[%s172 + $0x150] sm:$0xff] %v257
                %v259 = vld [vmem:[%s171 + $0x518] sm:$0xff]
                %260 = vst [vmem:[%s172 + $0x158] sm:$0xff] %v259
                %v261 = vld [vmem:[%s171 + $0x520] sm:$0xff]
                %262 = vst [vmem:[%s172 + $0x160] sm:$0xff] %v261
                %v263 = vld [vmem:[%s171 + $0x528] sm:$0xff]
                %264 = vst [vmem:[%s172 + $0x168] sm:$0xff] %v263
                %v265 = vld [vmem:[%s171 + $0x530] sm:$0xff]
                %266 = vst [vmem:[%s172 + $0x170] sm:$0xff] %v265
                %v267 = vld [vmem:[%s171 + $0x538] sm:$0xff]
                %268 = vst [vmem:[%s172 + $0x178] sm:$0xff] %v267
                %v269 = vld [vmem:[%s171 + $0x540] sm:$0xff]
                %270 = vst [vmem:[%s172 + $0x180] sm:$0xff] %v269
                %v271 = vld [vmem:[%s171 + $0x548] sm:$0xff]
                %272 = vst [vmem:[%s172 + $0x188] sm:$0xff] %v271
                %v273 = vld [vmem:[%s171 + $0x550] sm:$0xff]
                %274 = vst [vmem:[%s172 + $0x190] sm:$0xff] %v273
                %v275 = vld [vmem:[%s171 + $0x558] sm:$0xff]
                %276 = vst [vmem:[%s172 + $0x198] sm:$0xff] %v275
                %v277 = vld [vmem:[%s171 + $0x560] sm:$0xff]
                %278 = vst [vmem:[%s172 + $0x1a0] sm:$0xff] %v277
                %v279 = vld [vmem:[%s171 + $0x568] sm:$0xff]
                %280 = vst [vmem:[%s172 + $0x1a8] sm:$0xff] %v279
                %v281 = vld [vmem:[%s171 + $0x570] sm:$0xff]
                %282 = vst [vmem:[%s172 + $0x1b0] sm:$0xff] %v281
                %v283 = vld [vmem:[%s171 + $0x578] sm:$0xff]
                %284 = vst [vmem:[%s172 + $0x1b8] sm:$0xff] %v283
                %v285 = vld [vmem:[%s171 + $0x580] sm:$0xff]
                %286 = vst [vmem:[%s172 + $0x1c0] sm:$0xff] %v285
                %v287 = vld [vmem:[%s171 + $0x588] sm:$0xff]
                %288 = vst [vmem:[%s172 + $0x1c8] sm:$0xff] %v287
                %v289 = vld [vmem:[%s171 + $0x590] sm:$0xff]
                %290 = vst [vmem:[%s172 + $0x1d0] sm:$0xff] %v289
                %v291 = vld [vmem:[%s171 + $0x598] sm:$0xff]
                %292 = vst [vmem:[%s172 + $0x1d8] sm:$0xff] %v291
                %v293 = vld [vmem:[%s171 + $0x5a0] sm:$0xff]
                %294 = vst [vmem:[%s172 + $0x1e0] sm:$0xff] %v293
                %v295 = vld [vmem:[%s171 + $0x5a8] sm:$0xff]
                %296 = vst [vmem:[%s172 + $0x1e8] sm:$0xff] %v295
                %v297 = vld [vmem:[%s171 + $0x5b0] sm:$0xff]
                %298 = vst [vmem:[%s172 + $0x1f0] sm:$0xff] %v297
                %v299 = vld [vmem:[%s171 + $0x5b8] sm:$0xff]
                %300 = vst [vmem:[%s172 + $0x1f8] sm:$0xff] %v299
                %v301 = vld [vmem:[%s171 + $0x5c0] sm:$0xff]
                %302 = vst [vmem:[%s172 + $0x200] sm:$0xff] %v301
                %v303 = vld [vmem:[%s171 + $0x5c8] sm:$0xff]
                %304 = vst [vmem:[%s172 + $0x208] sm:$0xff] %v303
                %v305 = vld [vmem:[%s171 + $0x5d0] sm:$0xff]
                %306 = vst [vmem:[%s172 + $0x210] sm:$0xff] %v305
                %v307 = vld [vmem:[%s171 + $0x5d8] sm:$0xff]
                %308 = vst [vmem:[%s172 + $0x218] sm:$0xff] %v307
                %v309 = vld [vmem:[%s171 + $0x5e0] sm:$0xff]
                %310 = vst [vmem:[%s172 + $0x220] sm:$0xff] %v309
                %v311 = vld [vmem:[%s171 + $0x5e8] sm:$0xff]
                %312 = vst [vmem:[%s172 + $0x228] sm:$0xff] %v311
                %v313 = vld [vmem:[%s171 + $0x5f0] sm:$0xff]
                %314 = vst [vmem:[%s172 + $0x230] sm:$0xff] %v313
                %v315 = vld [vmem:[%s171 + $0x5f8] sm:$0xff]
                %316 = vst [vmem:[%s172 + $0x238] sm:$0xff] %v315
                %v317 = vld [vmem:[%s171 + $0x600] sm:$0xff]
                %318 = vst [vmem:[%s172 + $0x240] sm:$0xff] %v317
                %v319 = vld [vmem:[%s171 + $0x608] sm:$0xff]
                %320 = vst [vmem:[%s172 + $0x248] sm:$0xff] %v319
                %v321 = vld [vmem:[%s171 + $0x610] sm:$0xff]
                %322 = vst [vmem:[%s172 + $0x250] sm:$0xff] %v321
                %v323 = vld [vmem:[%s171 + $0x618] sm:$0xff]
                %324 = vst [vmem:[%s172 + $0x258] sm:$0xff] %v323
                %v325 = vld [vmem:[%s171 + $0x620] sm:$0xff]
                %326 = vst [vmem:[%s172 + $0x260] sm:$0xff] %v325
                %v327 = vld [vmem:[%s171 + $0x628] sm:$0xff]
                %328 = vst [vmem:[%s172 + $0x268] sm:$0xff] %v327
                %v329 = vld [vmem:[%s171 + $0x630] sm:$0xff]
                %330 = vst [vmem:[%s172 + $0x270] sm:$0xff] %v329
                %v331 = vld [vmem:[%s171 + $0x638] sm:$0xff]
                %332 = vst [vmem:[%s172 + $0x278] sm:$0xff] %v331
              $region41: #{tpu_custom_call.1} parent=35 // loop_footer
                %s170 = sadd.s32 1, %s166
              $region42: #{tpu_custom_call.1} parent=35 // loop_footer_branch
                %165 = sbr.rel target = $region38
              $region43: #{tpu_custom_call.1} parent=35 // loop_exit
                _
            $region36: #{tpu_custom_call.1} parent=27 // pred_fallthru
              _
          $region28: #{tpu_custom_call.1} parent=23 // pred_fallthru
            _
          %505 = vnop
        $region24: #{tpu_custom_call.1} parent=19 // pred_fallthru
          _
        // Predicated region
        $region59: #{tpu_custom_call.1} parent=19 // pred_check
          %p506 = pneg %p70
        $region60: #{tpu_custom_call.1} parent=19 // pred_check_branch
          %508 = sbr.rel (%p506) target = $region62
        $region61: #{tpu_custom_call.1} parent=19 // pred_region
          %s509 = smul.u32 40, %s18
          %p510 = scmp.lt.s32.totalorder %s509, 159
          %s511 = scalar_select %p510, %s509, 159
          %s512 = smul.addr %s511, 4
          %s513 = scalar_lea.vmem %s1, %s512
          %s514 = smul.u32 40, %s18
        $region62: #{tpu_custom_call.1} parent=19 // pred_fallthru
          _
      $region20: #{tpu_custom_call.1} parent=5 // pred_fallthru
        _
      %p515 = scmp.le.s32.totalorder 1, %s10
      %p516 = scmp.lt.s32.totalorder %s10, 5
      %p517 = pnand %p515, %p516
      %p518 = pneg %p517
      // Predicated region
      $region63: #{tpu_custom_call.1} parent=5 // pred_check
        _
      $region64: #{tpu_custom_call.1} parent=5 // pred_check_branch
        %520 = sbr.rel (%p517) target = $region66
      $region65: #{tpu_custom_call.1} parent=5 // pred_region
        %s521 = ssub.s32 %s10, 1
        %s522 = sand.u32 %s37, 1
        %s523 = sand.u32 %s37, 1
        %s524 = smul.addr %s523, 640
        %s525 = scalar_lea.vmem [#allocation2], %s524
        // Predicated region
        $region67: #{tpu_custom_call.1} parent=65 // pred_check
          %p526 = pneg %p50
        $region68: #{tpu_custom_call.1} parent=65 // pred_check_branch
          %528 = sbr.rel (%p526) target = $region70
        $region69: #{tpu_custom_call.1} parent=65 // pred_region
          _
        $region70: #{tpu_custom_call.1} parent=65 // pred_fallthru
          _
        %s529 = sand.u32 %s37, 1
        %s530 = sand.u32 %s37, 1
        %s531 = smul.addr %s530, 640
        %s532 = scalar_lea.vmem [#allocation2], %s531
        %p533 = pneg %p50
        %p534 = pneg %p47
        %s535 = smul.u32 40, %s20
        %p536 = scmp.lt.s32.totalorder %s535, 159
        %s537 = scalar_select %p536, %s535, 159
        %s538 = smul.addr %s537, 4
        %s539 = scalar_lea.vmem %s1, %s538
        %p540 = pneg %p76
        %p541 = pneg %p73
        %p542 = pneg %p97
        %p543 = pneg %p94
        %p544 = pneg %p123
        %p545 = pneg %p120
        %s546 = smul.u32 2, %s19
        %s547 = smul.u32 40, %s20
        %s548 = smul.u32 40, %s20
        %p549 = scmp.lt.s32.totalorder %s548, 159
        %s550 = scalar_select %p549, %s548, 159
        %s551 = smul.addr %s550, 4
        %s552 = scalar_lea.vmem %s1, %s551
        %s553 = smul.u32 40, %s20
        %p555 = scmp.eq.s32.totalorder %s20, 0
        // Predicated region
        $region71: #{tpu_custom_call.1} parent=65 // pred_check
          %p556 = pneg %p555
        $region72: #{tpu_custom_call.1} parent=65 // pred_check_branch
          %558 = sbr.rel (%p556) target = $region74
        $region73: #{tpu_custom_call.1} parent=65 // pred_region
          %v559 = vld [vmem:[%s2] sm:$0x1]
          %v561 = vlaneseq
          %v562 = vshrl.u32 %v561, 7
          %v563 = vsub.s32 0, %v562
          %v564 = vrot.slane %v559, %v563
          %566 = vst [vmem:[#allocation3] sm:$0x3] %v564
        $region74: #{tpu_custom_call.1} parent=65 // pred_fallthru
          _
        %v567 = vld [vmem:[%s525] sm:$0xff]
        %v568 = vld [vmem:[%s525 + $0x8] sm:$0xff]
        %v569 = vld [vmem:[%s525 + $0x10] sm:$0xff]
        %v570 = vld [vmem:[%s525 + $0x18] sm:$0xff]
        %v571 = vld [vmem:[%s525 + $0x20] sm:$0xff]
        %v572 = vld [vmem:[%s525 + $0x28] sm:$0xff]
        %v573 = vld [vmem:[%s525 + $0x30] sm:$0xff]
        %v574 = vld [vmem:[%s525 + $0x38] sm:$0xff]
        %v575 = vld [vmem:[%s525 + $0x40] sm:$0xff]
        %v576 = vld [vmem:[%s525 + $0x48] sm:$0xff]
        %v577 = vld [vmem:[%s525 + $0x50] sm:$0xff]
        %v578 = vld [vmem:[%s525 + $0x58] sm:$0xff]
        %v579 = vld [vmem:[%s525 + $0x60] sm:$0xff]
        %v580 = vld [vmem:[%s525 + $0x68] sm:$0xff]
        %v581 = vld [vmem:[%s525 + $0x70] sm:$0xff]
        %v582 = vld [vmem:[%s525 + $0x78] sm:$0xff]
        %v583 = vld [vmem:[%s525 + $0x80] sm:$0xff]
        %v584 = vld [vmem:[%s525 + $0x88] sm:$0xff]
        %v585 = vld [vmem:[%s525 + $0x90] sm:$0xff]
        %v586 = vld [vmem:[%s525 + $0x98] sm:$0xff]
        %v587 = vld [vmem:[%s525 + $0xa0] sm:$0xff]
        %v588 = vld [vmem:[%s525 + $0xa8] sm:$0xff]
        %v589 = vld [vmem:[%s525 + $0xb0] sm:$0xff]
        %v590 = vld [vmem:[%s525 + $0xb8] sm:$0xff]
        %v591 = vld [vmem:[%s525 + $0xc0] sm:$0xff]
        %v592 = vld [vmem:[%s525 + $0xc8] sm:$0xff]
        %v593 = vld [vmem:[%s525 + $0xd0] sm:$0xff]
        %v594 = vld [vmem:[%s525 + $0xd8] sm:$0xff]
        %v595 = vld [vmem:[%s525 + $0xe0] sm:$0xff]
        %v596 = vld [vmem:[%s525 + $0xe8] sm:$0xff]
        %v597 = vld [vmem:[%s525 + $0xf0] sm:$0xff]
        %v598 = vld [vmem:[%s525 + $0xf8] sm:$0xff]
        %v599 = vld [vmem:[%s525 + $0x100] sm:$0xff]
        %v600 = vld [vmem:[%s525 + $0x108] sm:$0xff]
        %v601 = vld [vmem:[%s525 + $0x110] sm:$0xff]
        %v602 = vld [vmem:[%s525 + $0x118] sm:$0xff]
        %v603 = vld [vmem:[%s525 + $0x120] sm:$0xff]
        %v604 = vld [vmem:[%s525 + $0x128] sm:$0xff]
        %v605 = vld [vmem:[%s525 + $0x130] sm:$0xff]
        %v606 = vld [vmem:[%s525 + $0x138] sm:$0xff]
        %v607 = vld [vmem:[%s525 + $0x140] sm:$0xff]
        %v608 = vld [vmem:[%s525 + $0x148] sm:$0xff]
        %v609 = vld [vmem:[%s525 + $0x150] sm:$0xff]
        %v610 = vld [vmem:[%s525 + $0x158] sm:$0xff]
        %v611 = vld [vmem:[%s525 + $0x160] sm:$0xff]
        %v612 = vld [vmem:[%s525 + $0x168] sm:$0xff]
        %v613 = vld [vmem:[%s525 + $0x170] sm:$0xff]
        %v614 = vld [vmem:[%s525 + $0x178] sm:$0xff]
        %v615 = vld [vmem:[%s525 + $0x180] sm:$0xff]
        %v616 = vld [vmem:[%s525 + $0x188] sm:$0xff]
        %v617 = vld [vmem:[%s525 + $0x190] sm:$0xff]
        %v618 = vld [vmem:[%s525 + $0x198] sm:$0xff]
        %v619 = vld [vmem:[%s525 + $0x1a0] sm:$0xff]
        %v620 = vld [vmem:[%s525 + $0x1a8] sm:$0xff]
        %v621 = vld [vmem:[%s525 + $0x1b0] sm:$0xff]
        %v622 = vld [vmem:[%s525 + $0x1b8] sm:$0xff]
        %v623 = vld [vmem:[%s525 + $0x1c0] sm:$0xff]
        %v624 = vld [vmem:[%s525 + $0x1c8] sm:$0xff]
        %v625 = vld [vmem:[%s525 + $0x1d0] sm:$0xff]
        %v626 = vld [vmem:[%s525 + $0x1d8] sm:$0xff]
        %v627 = vld [vmem:[%s525 + $0x1e0] sm:$0xff]
        %v628 = vld [vmem:[%s525 + $0x1e8] sm:$0xff]
        %v629 = vld [vmem:[%s525 + $0x1f0] sm:$0xff]
        %v630 = vld [vmem:[%s525 + $0x1f8] sm:$0xff]
        %v631 = vld [vmem:[%s525 + $0x200] sm:$0xff]
        %v632 = vld [vmem:[%s525 + $0x208] sm:$0xff]
        %v633 = vld [vmem:[%s525 + $0x210] sm:$0xff]
        %v634 = vld [vmem:[%s525 + $0x218] sm:$0xff]
        %v635 = vld [vmem:[%s525 + $0x220] sm:$0xff]
        %v636 = vld [vmem:[%s525 + $0x228] sm:$0xff]
        %v637 = vld [vmem:[%s525 + $0x230] sm:$0xff]
        %v638 = vld [vmem:[%s525 + $0x238] sm:$0xff]
        %v639 = vld [vmem:[%s525 + $0x240] sm:$0xff]
        %v640 = vld [vmem:[%s525 + $0x248] sm:$0xff]
        %v641 = vld [vmem:[%s525 + $0x250] sm:$0xff]
        %v642 = vld [vmem:[%s525 + $0x258] sm:$0xff]
        %v643 = vld [vmem:[%s525 + $0x260] sm:$0xff]
        %v644 = vld [vmem:[%s525 + $0x268] sm:$0xff]
        %v645 = vld [vmem:[%s525 + $0x270] sm:$0xff]
        %v646 = vld [vmem:[%s525 + $0x278] sm:$0xff]
        %vm647 = vcmask 523264
        %v648 = vsel %vm647, %v567, 0.0
        %649 = vadd.xlane.f32.xlu0 %v648
        %v650 = vpop.xlane.xlu0 %649
        %v651 = vsel %vm647, %v568, 0.0
        %652 = vadd.xlane.f32.xlu0 %v651
        %v653 = vpop.xlane.xlu0 %652
        %v654 = vsel %vm647, %v569, 0.0
        %655 = vadd.xlane.f32.xlu0 %v654
        %v656 = vpop.xlane.xlu0 %655
        %v657 = vsel %vm647, %v570, 0.0
        %658 = vadd.xlane.f32.xlu0 %v657
        %v659 = vpop.xlane.xlu0 %658
        %v660 = vsel %vm647, %v571, 0.0
        %661 = vadd.xlane.f32.xlu0 %v660
        %v662 = vpop.xlane.xlu0 %661
        %v663 = vsel %vm647, %v572, 0.0
        %664 = vadd.xlane.f32.xlu0 %v663
        %v665 = vpop.xlane.xlu0 %664
        %v666 = vsel %vm647, %v573, 0.0
        %667 = vadd.xlane.f32.xlu0 %v666
        %v668 = vpop.xlane.xlu0 %667
        %v669 = vsel %vm647, %v574, 0.0
        %670 = vadd.xlane.f32.xlu0 %v669
        %v671 = vpop.xlane.xlu0 %670
        %v672 = vsel %vm647, %v575, 0.0
        %673 = vadd.xlane.f32.xlu0 %v672
        %v674 = vpop.xlane.xlu0 %673
        %v675 = vsel %vm647, %v576, 0.0
        %676 = vadd.xlane.f32.xlu0 %v675
        %v677 = vpop.xlane.xlu0 %676
        %v678 = vsel %vm647, %v577, 0.0
        %679 = vadd.xlane.f32.xlu0 %v678
        %v680 = vpop.xlane.xlu0 %679
        %v681 = vsel %vm647, %v578, 0.0
        %682 = vadd.xlane.f32.xlu0 %v681
        %v683 = vpop.xlane.xlu0 %682
        %v684 = vsel %vm647, %v579, 0.0
        %685 = vadd.xlane.f32.xlu0 %v684
        %v686 = vpop.xlane.xlu0 %685
        %v687 = vsel %vm647, %v580, 0.0
        %688 = vadd.xlane.f32.xlu0 %v687
        %v689 = vpop.xlane.xlu0 %688
        %v690 = vsel %vm647, %v581, 0.0
        %691 = vadd.xlane.f32.xlu0 %v690
        %v692 = vpop.xlane.xlu0 %691
        %v693 = vsel %vm647, %v582, 0.0
        %694 = vadd.xlane.f32.xlu0 %v693
        %v695 = vpop.xlane.xlu0 %694
        %v696 = vsel %vm647, %v583, 0.0
        %697 = vadd.xlane.f32.xlu0 %v696
        %v698 = vpop.xlane.xlu0 %697
        %v699 = vsel %vm647, %v584, 0.0
        %700 = vadd.xlane.f32.xlu0 %v699
        %v701 = vpop.xlane.xlu0 %700
        %v702 = vsel %vm647, %v585, 0.0
        %703 = vadd.xlane.f32.xlu0 %v702
        %v704 = vpop.xlane.xlu0 %703
        %v705 = vsel %vm647, %v586, 0.0
        %706 = vadd.xlane.f32.xlu0 %v705
        %v707 = vpop.xlane.xlu0 %706
        %v708 = vsel %vm647, %v587, 0.0
        %709 = vadd.xlane.f32.xlu0 %v708
        %v710 = vpop.xlane.xlu0 %709
        %v711 = vsel %vm647, %v588, 0.0
        %712 = vadd.xlane.f32.xlu0 %v711
        %v713 = vpop.xlane.xlu0 %712
        %v714 = vsel %vm647, %v589, 0.0
        %715 = vadd.xlane.f32.xlu0 %v714
        %v716 = vpop.xlane.xlu0 %715
        %v717 = vsel %vm647, %v590, 0.0
        %718 = vadd.xlane.f32.xlu0 %v717
        %v719 = vpop.xlane.xlu0 %718
        %v720 = vsel %vm647, %v591, 0.0
        %721 = vadd.xlane.f32.xlu0 %v720
        %v722 = vpop.xlane.xlu0 %721
        %v723 = vsel %vm647, %v592, 0.0
        %724 = vadd.xlane.f32.xlu0 %v723
        %v725 = vpop.xlane.xlu0 %724
        %v726 = vsel %vm647, %v593, 0.0
        %727 = vadd.xlane.f32.xlu0 %v726
        %v728 = vpop.xlane.xlu0 %727
        %v729 = vsel %vm647, %v594, 0.0
        %730 = vadd.xlane.f32.xlu0 %v729
        %v731 = vpop.xlane.xlu0 %730
        %v732 = vsel %vm647, %v595, 0.0
        %733 = vadd.xlane.f32.xlu0 %v732
        %v734 = vpop.xlane.xlu0 %733
        %v735 = vsel %vm647, %v596, 0.0
        %736 = vadd.xlane.f32.xlu0 %v735
        %v737 = vpop.xlane.xlu0 %736
        %v738 = vsel %vm647, %v597, 0.0
        %739 = vadd.xlane.f32.xlu0 %v738
        %v740 = vpop.xlane.xlu0 %739
        %v741 = vsel %vm647, %v598, 0.0
        %742 = vadd.xlane.f32.xlu0 %v741
        %v743 = vpop.xlane.xlu0 %742
        %v744 = vsel %vm647, %v599, 0.0
        %745 = vadd.xlane.f32.xlu0 %v744
        %v746 = vpop.xlane.xlu0 %745
        %v747 = vsel %vm647, %v600, 0.0
        %748 = vadd.xlane.f32.xlu0 %v747
        %v749 = vpop.xlane.xlu0 %748
        %v750 = vsel %vm647, %v601, 0.0
        %751 = vadd.xlane.f32.xlu0 %v750
        %v752 = vpop.xlane.xlu0 %751
        %v753 = vsel %vm647, %v602, 0.0
        %754 = vadd.xlane.f32.xlu0 %v753
        %v755 = vpop.xlane.xlu0 %754
        %v756 = vsel %vm647, %v603, 0.0
        %757 = vadd.xlane.f32.xlu0 %v756
        %v758 = vpop.xlane.xlu0 %757
        %v759 = vsel %vm647, %v604, 0.0
        %760 = vadd.xlane.f32.xlu0 %v759
        %v761 = vpop.xlane.xlu0 %760
        %v762 = vsel %vm647, %v605, 0.0
        %763 = vadd.xlane.f32.xlu0 %v762
        %v764 = vpop.xlane.xlu0 %763
        %v765 = vsel %vm647, %v606, 0.0
        %766 = vadd.xlane.f32.xlu0 %v765
        %v767 = vpop.xlane.xlu0 %766
        %v768 = vsel %vm647, %v607, 0.0
        %769 = vadd.xlane.f32.xlu0 %v768
        %v770 = vpop.xlane.xlu0 %769
        %v771 = vsel %vm647, %v608, 0.0
        %772 = vadd.xlane.f32.xlu0 %v771
        %v773 = vpop.xlane.xlu0 %772
        %v774 = vsel %vm647, %v609, 0.0
        %775 = vadd.xlane.f32.xlu0 %v774
        %v776 = vpop.xlane.xlu0 %775
        %v777 = vsel %vm647, %v610, 0.0
        %778 = vadd.xlane.f32.xlu0 %v777
        %v779 = vpop.xlane.xlu0 %778
        %v780 = vsel %vm647, %v611, 0.0
        %781 = vadd.xlane.f32.xlu0 %v780
        %v782 = vpop.xlane.xlu0 %781
        %v783 = vsel %vm647, %v612, 0.0
        %784 = vadd.xlane.f32.xlu0 %v783
        %v785 = vpop.xlane.xlu0 %784
        %v786 = vsel %vm647, %v613, 0.0
        %787 = vadd.xlane.f32.xlu0 %v786
        %v788 = vpop.xlane.xlu0 %787
        %v789 = vsel %vm647, %v614, 0.0
        %790 = vadd.xlane.f32.xlu0 %v789
        %v791 = vpop.xlane.xlu0 %790
        %v792 = vsel %vm647, %v615, 0.0
        %793 = vadd.xlane.f32.xlu0 %v792
        %v794 = vpop.xlane.xlu0 %793
        %v795 = vsel %vm647, %v616, 0.0
        %796 = vadd.xlane.f32.xlu0 %v795
        %v797 = vpop.xlane.xlu0 %796
        %v798 = vsel %vm647, %v617, 0.0
        %799 = vadd.xlane.f32.xlu0 %v798
        %v800 = vpop.xlane.xlu0 %799
        %v801 = vsel %vm647, %v618, 0.0
        %802 = vadd.xlane.f32.xlu0 %v801
        %v803 = vpop.xlane.xlu0 %802
        %v804 = vsel %vm647, %v619, 0.0
        %805 = vadd.xlane.f32.xlu0 %v804
        %v806 = vpop.xlane.xlu0 %805
        %v807 = vsel %vm647, %v620, 0.0
        %808 = vadd.xlane.f32.xlu0 %v807
        %v809 = vpop.xlane.xlu0 %808
        %v810 = vsel %vm647, %v621, 0.0
        %811 = vadd.xlane.f32.xlu0 %v810
        %v812 = vpop.xlane.xlu0 %811
        %v813 = vsel %vm647, %v622, 0.0
        %814 = vadd.xlane.f32.xlu0 %v813
        %v815 = vpop.xlane.xlu0 %814
        %v816 = vsel %vm647, %v623, 0.0
        %817 = vadd.xlane.f32.xlu0 %v816
        %v818 = vpop.xlane.xlu0 %817
        %v819 = vsel %vm647, %v624, 0.0
        %820 = vadd.xlane.f32.xlu0 %v819
        %v821 = vpop.xlane.xlu0 %820
        %v822 = vsel %vm647, %v625, 0.0
        %823 = vadd.xlane.f32.xlu0 %v822
        %v824 = vpop.xlane.xlu0 %823
        %v825 = vsel %vm647, %v626, 0.0
        %826 = vadd.xlane.f32.xlu0 %v825
        %v827 = vpop.xlane.xlu0 %826
        %v828 = vsel %vm647, %v627, 0.0
        %829 = vadd.xlane.f32.xlu0 %v828
        %v830 = vpop.xlane.xlu0 %829
        %v831 = vsel %vm647, %v628, 0.0
        %832 = vadd.xlane.f32.xlu0 %v831
        %v833 = vpop.xlane.xlu0 %832
        %v834 = vsel %vm647, %v629, 0.0
        %835 = vadd.xlane.f32.xlu0 %v834
        %v836 = vpop.xlane.xlu0 %835
        %v837 = vsel %vm647, %v630, 0.0
        %838 = vadd.xlane.f32.xlu0 %v837
        %v839 = vpop.xlane.xlu0 %838
        %v840 = vsel %vm647, %v631, 0.0
        %841 = vadd.xlane.f32.xlu0 %v840
        %v842 = vpop.xlane.xlu0 %841
        %v843 = vsel %vm647, %v632, 0.0
        %844 = vadd.xlane.f32.xlu0 %v843
        %v845 = vpop.xlane.xlu0 %844
        %v846 = vsel %vm647, %v633, 0.0
        %847 = vadd.xlane.f32.xlu0 %v846
        %v848 = vpop.xlane.xlu0 %847
        %v849 = vsel %vm647, %v634, 0.0
        %850 = vadd.xlane.f32.xlu0 %v849
        %v851 = vpop.xlane.xlu0 %850
        %v852 = vsel %vm647, %v635, 0.0
        %853 = vadd.xlane.f32.xlu0 %v852
        %v854 = vpop.xlane.xlu0 %853
        %v855 = vsel %vm647, %v636, 0.0
        %856 = vadd.xlane.f32.xlu0 %v855
        %v857 = vpop.xlane.xlu0 %856
        %v858 = vsel %vm647, %v637, 0.0
        %859 = vadd.xlane.f32.xlu0 %v858
        %v860 = vpop.xlane.xlu0 %859
        %v861 = vsel %vm647, %v638, 0.0
        %862 = vadd.xlane.f32.xlu0 %v861
        %v863 = vpop.xlane.xlu0 %862
        %v864 = vsel %vm647, %v639, 0.0
        %865 = vadd.xlane.f32.xlu0 %v864
        %v866 = vpop.xlane.xlu0 %865
        %v867 = vsel %vm647, %v640, 0.0
        %868 = vadd.xlane.f32.xlu0 %v867
        %v869 = vpop.xlane.xlu0 %868
        %v870 = vsel %vm647, %v641, 0.0
        %871 = vadd.xlane.f32.xlu0 %v870
        %v872 = vpop.xlane.xlu0 %871
        %v873 = vsel %vm647, %v642, 0.0
        %874 = vadd.xlane.f32.xlu0 %v873
        %v875 = vpop.xlane.xlu0 %874
        %v876 = vsel %vm647, %v643, 0.0
        %877 = vadd.xlane.f32.xlu0 %v876
        %v878 = vpop.xlane.xlu0 %877
        %v879 = vsel %vm647, %v644, 0.0
        %880 = vadd.xlane.f32.xlu0 %v879
        %v881 = vpop.xlane.xlu0 %880
        %v882 = vsel %vm647, %v645, 0.0
        %883 = vadd.xlane.f32.xlu0 %v882
        %v884 = vpop.xlane.xlu0 %883
        %v885 = vsel %vm647, %v646, 0.0
        %886 = vadd.xlane.f32.xlu0 %v885
        %v887 = vpop.xlane.xlu0 %886
        %v888 = vld [vmem:[#allocation3] sm:$0x3]
        %v889 = vpack.c.bf16 %v653, %v650
        %v890 = vpack.c.bf16 %v659, %v656
        %v891 = vpack.c.bf16 %v665, %v662
        %v892 = vpack.c.bf16 %v671, %v668
        %v893 = vpack.c.bf16 %v677, %v674
        %v894 = vpack.c.bf16 %v683, %v680
        %v895 = vpack.c.bf16 %v689, %v686
        %v896 = vpack.c.bf16 %v695, %v692
        %v897 = vpack.c.bf16 %v701, %v698
        %v898 = vpack.c.bf16 %v707, %v704
        %v899 = vpack.c.bf16 %v713, %v710
        %v900 = vpack.c.bf16 %v719, %v716
        %v901 = vpack.c.bf16 %v725, %v722
        %v902 = vpack.c.bf16 %v731, %v728
        %v903 = vpack.c.bf16 %v737, %v734
        %v904 = vpack.c.bf16 %v743, %v740
        %v905 = vpack.c.bf16 %v749, %v746
        %v906 = vpack.c.bf16 %v755, %v752
        %v907 = vpack.c.bf16 %v761, %v758
        %v908 = vpack.c.bf16 %v767, %v764
        %v909 = vpack.c.bf16 %v773, %v770
        %v910 = vpack.c.bf16 %v779, %v776
        %v911 = vpack.c.bf16 %v785, %v782
        %v912 = vpack.c.bf16 %v791, %v788
        %v913 = vpack.c.bf16 %v797, %v794
        %v914 = vpack.c.bf16 %v803, %v800
        %v915 = vpack.c.bf16 %v809, %v806
        %v916 = vpack.c.bf16 %v815, %v812
        %v917 = vpack.c.bf16 %v821, %v818
        %v918 = vpack.c.bf16 %v827, %v824
        %v919 = vpack.c.bf16 %v833, %v830
        %v920 = vpack.c.bf16 %v839, %v836
        %v921 = vpack.c.bf16 %v845, %v842
        %v922 = vpack.c.bf16 %v851, %v848
        %v923 = vpack.c.bf16 %v857, %v854
        %v924 = vpack.c.bf16 %v863, %v860
        %v925 = vpack.c.bf16 %v869, %v866
        %v926 = vpack.c.bf16 %v875, %v872
        %v927 = vpack.c.bf16 %v881, %v878
        %v928 = vpack.c.bf16 %v887, %v884
        %v929 = vld [vmem:[%s552] sm:$0xf]
        %v930 = vld [vmem:[%s552 + $0x4] sm:$0xf]
        %v931 = vld [vmem:[%s552 + $0x8] sm:$0xf]
        %v932 = vld [vmem:[%s552 + $0xc] sm:$0xf]
        %v933 = vld [vmem:[%s552 + $0x10] sm:$0xf]
        %v934 = vld [vmem:[%s552 + $0x14] sm:$0xf]
        %v935 = vld [vmem:[%s552 + $0x18] sm:$0xf]
        %v936 = vld [vmem:[%s552 + $0x1c] sm:$0xf]
        %v937 = vld [vmem:[%s552 + $0x20] sm:$0xf]
        %v938 = vld [vmem:[%s552 + $0x24] sm:$0xf]
        %v939 = vld [vmem:[%s552 + $0x28] sm:$0xf]
        %v940 = vld [vmem:[%s552 + $0x2c] sm:$0xf]
        %v941 = vld [vmem:[%s552 + $0x30] sm:$0xf]
        %v942 = vld [vmem:[%s552 + $0x34] sm:$0xf]
        %v943 = vld [vmem:[%s552 + $0x38] sm:$0xf]
        %v944 = vld [vmem:[%s552 + $0x3c] sm:$0xf]
        %v945 = vld [vmem:[%s552 + $0x40] sm:$0xf]
        %v946 = vld [vmem:[%s552 + $0x44] sm:$0xf]
        %v947 = vld [vmem:[%s552 + $0x48] sm:$0xf]
        %v948 = vld [vmem:[%s552 + $0x4c] sm:$0xf]
        %v949 = vld [vmem:[%s552 + $0x50] sm:$0xf]
        %v950 = vld [vmem:[%s552 + $0x54] sm:$0xf]
        %v951 = vld [vmem:[%s552 + $0x58] sm:$0xf]
        %v952 = vld [vmem:[%s552 + $0x5c] sm:$0xf]
        %v953 = vld [vmem:[%s552 + $0x60] sm:$0xf]
        %v954 = vld [vmem:[%s552 + $0x64] sm:$0xf]
        %v955 = vld [vmem:[%s552 + $0x68] sm:$0xf]
        %v956 = vld [vmem:[%s552 + $0x6c] sm:$0xf]
        %v957 = vld [vmem:[%s552 + $0x70] sm:$0xf]
        %v958 = vld [vmem:[%s552 + $0x74] sm:$0xf]
        %v959 = vld [vmem:[%s552 + $0x78] sm:$0xf]
        %v960 = vld [vmem:[%s552 + $0x7c] sm:$0xf]
        %v961 = vld [vmem:[%s552 + $0x80] sm:$0xf]
        %v962 = vld [vmem:[%s552 + $0x84] sm:$0xf]
        %v963 = vld [vmem:[%s552 + $0x88] sm:$0xf]
        %v964 = vld [vmem:[%s552 + $0x8c] sm:$0xf]
        %v965 = vld [vmem:[%s552 + $0x90] sm:$0xf]
        %v966 = vld [vmem:[%s552 + $0x94] sm:$0xf]
        %v967 = vld [vmem:[%s552 + $0x98] sm:$0xf]
        %v968 = vld [vmem:[%s552 + $0x9c] sm:$0xf]
        %v1009 = vunpack.c.l.b16 %v889
        %v1010 = vunpack.c.h.b16 %v889
        %v1011 = vunpack.c.l.b16 %v890
        %v1012 = vunpack.c.h.b16 %v890
        %v1013 = vunpack.c.l.b16 %v891
        %v1014 = vunpack.c.h.b16 %v891
        %v1015 = vunpack.c.l.b16 %v892
        %v1016 = vunpack.c.h.b16 %v892
        %v1017 = vunpack.c.l.b16 %v893
        %v1018 = vunpack.c.h.b16 %v893
        %v1019 = vunpack.c.l.b16 %v894
        %v1020 = vunpack.c.h.b16 %v894
        %v1021 = vunpack.c.l.b16 %v895
        %v1022 = vunpack.c.h.b16 %v895
        %v1023 = vunpack.c.l.b16 %v896
        %v1024 = vunpack.c.h.b16 %v896
        %v1025 = vunpack.c.l.b16 %v897
        %v1026 = vunpack.c.h.b16 %v897
        %v1027 = vunpack.c.l.b16 %v898
        %v1028 = vunpack.c.h.b16 %v898
        %v1029 = vunpack.c.l.b16 %v899
        %v1030 = vunpack.c.h.b16 %v899
        %v1031 = vunpack.c.l.b16 %v900
        %v1032 = vunpack.c.h.b16 %v900
        %v1033 = vunpack.c.l.b16 %v901
        %v1034 = vunpack.c.h.b16 %v901
        %v1035 = vunpack.c.l.b16 %v902
        %v1036 = vunpack.c.h.b16 %v902
        %v1037 = vunpack.c.l.b16 %v903
        %v1038 = vunpack.c.h.b16 %v903
        %v1039 = vunpack.c.l.b16 %v904
        %v1040 = vunpack.c.h.b16 %v904
        %v1041 = vunpack.c.l.b16 %v905
        %v1042 = vunpack.c.h.b16 %v905
        %v1043 = vunpack.c.l.b16 %v906
        %v1044 = vunpack.c.h.b16 %v906
        %v1045 = vunpack.c.l.b16 %v907
        %v1046 = vunpack.c.h.b16 %v907
        %v1047 = vunpack.c.l.b16 %v908
        %v1048 = vunpack.c.h.b16 %v908
        %v1049 = vunpack.c.l.b16 %v909
        %v1050 = vunpack.c.h.b16 %v909
        %v1051 = vunpack.c.l.b16 %v910
        %v1052 = vunpack.c.h.b16 %v910
        %v1053 = vunpack.c.l.b16 %v911
        %v1054 = vunpack.c.h.b16 %v911
        %v1055 = vunpack.c.l.b16 %v912
        %v1056 = vunpack.c.h.b16 %v912
        %v1057 = vunpack.c.l.b16 %v913
        %v1058 = vunpack.c.h.b16 %v913
        %v1059 = vunpack.c.l.b16 %v914
        %v1060 = vunpack.c.h.b16 %v914
        %v1061 = vunpack.c.l.b16 %v915
        %v1062 = vunpack.c.h.b16 %v915
        %v1063 = vunpack.c.l.b16 %v916
        %v1064 = vunpack.c.h.b16 %v916
        %v1065 = vunpack.c.l.b16 %v917
        %v1066 = vunpack.c.h.b16 %v917
        %v1067 = vunpack.c.l.b16 %v918
        %v1068 = vunpack.c.h.b16 %v918
        %v1069 = vunpack.c.l.b16 %v919
        %v1070 = vunpack.c.h.b16 %v919
        %v1071 = vunpack.c.l.b16 %v920
        %v1072 = vunpack.c.h.b16 %v920
        %v1073 = vunpack.c.l.b16 %v921
        %v1074 = vunpack.c.h.b16 %v921
        %v1075 = vunpack.c.l.b16 %v922
        %v1076 = vunpack.c.h.b16 %v922
        %v1077 = vunpack.c.l.b16 %v923
        %v1078 = vunpack.c.h.b16 %v923
        %v1079 = vunpack.c.l.b16 %v924
        %v1080 = vunpack.c.h.b16 %v924
        %v1081 = vunpack.c.l.b16 %v925
        %v1082 = vunpack.c.h.b16 %v925
        %v1083 = vunpack.c.l.b16 %v926
        %v1084 = vunpack.c.h.b16 %v926
        %v1085 = vunpack.c.l.b16 %v927
        %v1086 = vunpack.c.h.b16 %v927
        %v1087 = vunpack.c.l.b16 %v928
        %v1088 = vunpack.c.h.b16 %v928
        %v1089 = vlaneseq
        %v1090 = vand.u32 %v1089, 127
        %v1091 = vlaneseq
        %v1092 = vshrl.u32 %v1091, 7
        %v1093 = vsub.s32 %v1090, %v1092
        %v1094 = vrot.slane %v1009, %v1093
        %v1095 = vadd.s32 %v1090, 4294967288
        %v1096 = vlaneseq
        %v1097 = vshrl.u32 %v1096, 7
        %v1098 = vsub.s32 %v1095, %v1097
        %v1099 = vrot.slane %v1010, %v1098
        %vm1100 = vcmask 130112
        %v1101 = vsel %vm1100, %v1099, %v1094
        %v1102 = vadd.s32 %v1090, 4294967280
        %v1103 = vlaneseq
        %v1104 = vshrl.u32 %v1103, 7
        %v1105 = vsub.s32 %v1102, %v1104
        %v1106 = vrot.slane %v1011, %v1105
        %vm1107 = vcmask 195712
        %v1108 = vsel %vm1107, %v1106, %v1101
        %v1109 = vadd.s32 %v1090, 4294967272
        %v1110 = vlaneseq
        %v1111 = vshrl.u32 %v1110, 7
        %v1112 = vsub.s32 %v1109, %v1111
        %v1113 = vrot.slane %v1012, %v1112
        %vm1114 = vcmask 261312
        %v1115 = vsel %vm1114, %v1113, %v1108
        %v1116 = vadd.s32 %v1090, 4294967264
        %v1117 = vlaneseq
        %v1118 = vshrl.u32 %v1117, 7
        %v1119 = vsub.s32 %v1116, %v1118
        %v1120 = vrot.slane %v1013, %v1119
        %vm1121 = vcmask 326912
        %v1122 = vsel %vm1121, %v1120, %v1115
        %v1123 = vadd.s32 %v1090, 4294967256
        %v1124 = vlaneseq
        %v1125 = vshrl.u32 %v1124, 7
        %v1126 = vsub.s32 %v1123, %v1125
        %v1127 = vrot.slane %v1014, %v1126
        %vm1128 = vcmask 392512
        %v1129 = vsel %vm1128, %v1127, %v1122
        %v1130 = vadd.s32 %v1090, 4294967248
        %v1131 = vlaneseq
        %v1132 = vshrl.u32 %v1131, 7
        %v1133 = vsub.s32 %v1130, %v1132
        %v1134 = vrot.slane %v1015, %v1133
        %vm1135 = vcmask 458112
        %v1136 = vsel %vm1135, %v1134, %v1129
        %v1137 = vadd.s32 %v1090, 4294967240
        %v1138 = vlaneseq
        %v1139 = vshrl.u32 %v1138, 7
        %v1140 = vsub.s32 %v1137, %v1139
        %v1141 = vrot.slane %v1016, %v1140
        %vm1142 = vcmask 523712
        %v1143 = vsel %vm1142, %v1141, %v1136
        %v1144 = vadd.s32 %v1090, 4294967232
        %v1145 = vlaneseq
        %v1146 = vshrl.u32 %v1145, 7
        %v1147 = vsub.s32 %v1144, %v1146
        %v1148 = vrot.slane %v1017, %v1147
        %vm1149 = vcmask 589312
        %v1150 = vsel %vm1149, %v1148, %v1143
        %v1151 = vadd.s32 %v1090, 4294967224
        %v1152 = vlaneseq
        %v1153 = vshrl.u32 %v1152, 7
        %v1154 = vsub.s32 %v1151, %v1153
        %v1155 = vrot.slane %v1018, %v1154
        %vm1156 = vcmask 654912
        %v1157 = vsel %vm1156, %v1155, %v1150
        %v1158 = vadd.s32 %v1090, 4294967216
        %v1159 = vlaneseq
        %v1160 = vshrl.u32 %v1159, 7
        %v1161 = vsub.s32 %v1158, %v1160
        %v1162 = vrot.slane %v1019, %v1161
        %vm1163 = vcmask 720512
        %v1164 = vsel %vm1163, %v1162, %v1157
        %v1165 = vadd.s32 %v1090, 4294967208
        %v1166 = vlaneseq
        %v1167 = vshrl.u32 %v1166, 7
        %v1168 = vsub.s32 %v1165, %v1167
        %v1169 = vrot.slane %v1020, %v1168
        %vm1170 = vcmask 786112
        %v1171 = vsel %vm1170, %v1169, %v1164
        %v1172 = vadd.s32 %v1090, 4294967200
        %v1173 = vlaneseq
        %v1174 = vshrl.u32 %v1173, 7
        %v1175 = vsub.s32 %v1172, %v1174
        %v1176 = vrot.slane %v1021, %v1175
        %vm1177 = vcmask 851712
        %v1178 = vsel %vm1177, %v1176, %v1171
        %v1179 = vadd.s32 %v1090, 4294967192
        %v1180 = vlaneseq
        %v1181 = vshrl.u32 %v1180, 7
        %v1182 = vsub.s32 %v1179, %v1181
        %v1183 = vrot.slane %v1022, %v1182
        %vm1184 = vcmask 917312
        %v1185 = vsel %vm1184, %v1183, %v1178
        %v1186 = vadd.s32 %v1090, 4294967184
        %v1187 = vlaneseq
        %v1188 = vshrl.u32 %v1187, 7
        %v1189 = vsub.s32 %v1186, %v1188
        %v1190 = vrot.slane %v1023, %v1189
        %vm1191 = vcmask 982912
        %v1192 = vsel %vm1191, %v1190, %v1185
        %v1193 = vadd.s32 %v1090, 4294967176
        %v1194 = vlaneseq
        %v1195 = vshrl.u32 %v1194, 7
        %v1196 = vsub.s32 %v1193, %v1195
        %v1197 = vrot.slane %v1024, %v1196
        %vm1198 = vcmask 1048512
        %v1199 = vsel %vm1198, %v1197, %v1192
        %v1200 = vlaneseq
        %v1201 = vshrl.u32 %v1200, 7
        %v1202 = vsub.s32 %v1090, %v1201
        %v1203 = vrot.slane %v1025, %v1202
        %v1204 = vlaneseq
        %v1205 = vshrl.u32 %v1204, 7
        %v1206 = vsub.s32 %v1095, %v1205
        %v1207 = vrot.slane %v1026, %v1206
        %v1208 = vsel %vm1100, %v1207, %v1203
        %v1209 = vlaneseq
        %v1210 = vshrl.u32 %v1209, 7
        %v1211 = vsub.s32 %v1102, %v1210
        %v1212 = vrot.slane %v1027, %v1211
        %v1213 = vsel %vm1107, %v1212, %v1208
        %v1214 = vlaneseq
        %v1215 = vshrl.u32 %v1214, 7
        %v1216 = vsub.s32 %v1109, %v1215
        %v1217 = vrot.slane %v1028, %v1216
        %v1218 = vsel %vm1114, %v1217, %v1213
        %v1219 = vlaneseq
        %v1220 = vshrl.u32 %v1219, 7
        %v1221 = vsub.s32 %v1116, %v1220
        %v1222 = vrot.slane %v1029, %v1221
        %v1223 = vsel %vm1121, %v1222, %v1218
        %v1224 = vlaneseq
        %v1225 = vshrl.u32 %v1224, 7
        %v1226 = vsub.s32 %v1123, %v1225
        %v1227 = vrot.slane %v1030, %v1226
        %v1228 = vsel %vm1128, %v1227, %v1223
        %v1229 = vlaneseq
        %v1230 = vshrl.u32 %v1229, 7
        %v1231 = vsub.s32 %v1130, %v1230
        %v1232 = vrot.slane %v1031, %v1231
        %v1233 = vsel %vm1135, %v1232, %v1228
        %v1234 = vlaneseq
        %v1235 = vshrl.u32 %v1234, 7
        %v1236 = vsub.s32 %v1137, %v1235
        %v1237 = vrot.slane %v1032, %v1236
        %v1238 = vsel %vm1142, %v1237, %v1233
        %v1239 = vlaneseq
        %v1240 = vshrl.u32 %v1239, 7
        %v1241 = vsub.s32 %v1144, %v1240
        %v1242 = vrot.slane %v1033, %v1241
        %v1243 = vsel %vm1149, %v1242, %v1238
        %v1244 = vlaneseq
        %v1245 = vshrl.u32 %v1244, 7
        %v1246 = vsub.s32 %v1151, %v1245
        %v1247 = vrot.slane %v1034, %v1246
        %v1248 = vsel %vm1156, %v1247, %v1243
        %v1249 = vlaneseq
        %v1250 = vshrl.u32 %v1249, 7
        %v1251 = vsub.s32 %v1158, %v1250
        %v1252 = vrot.slane %v1035, %v1251
        %v1253 = vsel %vm1163, %v1252, %v1248
        %v1254 = vlaneseq
        %v1255 = vshrl.u32 %v1254, 7
        %v1256 = vsub.s32 %v1165, %v1255
        %v1257 = vrot.slane %v1036, %v1256
        %v1258 = vsel %vm1170, %v1257, %v1253
        %v1259 = vlaneseq
        %v1260 = vshrl.u32 %v1259, 7
        %v1261 = vsub.s32 %v1172, %v1260
        %v1262 = vrot.slane %v1037, %v1261
        %v1263 = vsel %vm1177, %v1262, %v1258
        %v1264 = vlaneseq
        %v1265 = vshrl.u32 %v1264, 7
        %v1266 = vsub.s32 %v1179, %v1265
        %v1267 = vrot.slane %v1038, %v1266
        %v1268 = vsel %vm1184, %v1267, %v1263
        %v1269 = vlaneseq
        %v1270 = vshrl.u32 %v1269, 7
        %v1271 = vsub.s32 %v1186, %v1270
        %v1272 = vrot.slane %v1039, %v1271
        %v1273 = vsel %vm1191, %v1272, %v1268
        %v1274 = vlaneseq
        %v1275 = vshrl.u32 %v1274, 7
        %v1276 = vsub.s32 %v1193, %v1275
        %v1277 = vrot.slane %v1040, %v1276
        %v1278 = vsel %vm1198, %v1277, %v1273
        %v1279 = vlaneseq
        %v1280 = vshrl.u32 %v1279, 7
        %v1281 = vsub.s32 %v1090, %v1280
        %v1282 = vrot.slane %v1041, %v1281
        %v1283 = vlaneseq
        %v1284 = vshrl.u32 %v1283, 7
        %v1285 = vsub.s32 %v1095, %v1284
        %v1286 = vrot.slane %v1042, %v1285
        %v1287 = vsel %vm1100, %v1286, %v1282
        %v1288 = vlaneseq
        %v1289 = vshrl.u32 %v1288, 7
        %v1290 = vsub.s32 %v1102, %v1289
        %v1291 = vrot.slane %v1043, %v1290
        %v1292 = vsel %vm1107, %v1291, %v1287
        %v1293 = vlaneseq
        %v1294 = vshrl.u32 %v1293, 7
        %v1295 = vsub.s32 %v1109, %v1294
        %v1296 = vrot.slane %v1044, %v1295
        %v1297 = vsel %vm1114, %v1296, %v1292
        %v1298 = vlaneseq
        %v1299 = vshrl.u32 %v1298, 7
        %v1300 = vsub.s32 %v1116, %v1299
        %v1301 = vrot.slane %v1045, %v1300
        %v1302 = vsel %vm1121, %v1301, %v1297
        %v1303 = vlaneseq
        %v1304 = vshrl.u32 %v1303, 7
        %v1305 = vsub.s32 %v1123, %v1304
        %v1306 = vrot.slane %v1046, %v1305
        %v1307 = vsel %vm1128, %v1306, %v1302
        %v1308 = vlaneseq
        %v1309 = vshrl.u32 %v1308, 7
        %v1310 = vsub.s32 %v1130, %v1309
        %v1311 = vrot.slane %v1047, %v1310
        %v1312 = vsel %vm1135, %v1311, %v1307
        %v1313 = vlaneseq
        %v1314 = vshrl.u32 %v1313, 7
        %v1315 = vsub.s32 %v1137, %v1314
        %v1316 = vrot.slane %v1048, %v1315
        %v1317 = vsel %vm1142, %v1316, %v1312
        %v1318 = vlaneseq
        %v1319 = vshrl.u32 %v1318, 7
        %v1320 = vsub.s32 %v1090, %v1319
        %v1321 = vrot.slane %v1049, %v1320
        %v1322 = vlaneseq
        %v1323 = vshrl.u32 %v1322, 7
        %v1324 = vsub.s32 %v1095, %v1323
        %v1325 = vrot.slane %v1050, %v1324
        %v1326 = vsel %vm1100, %v1325, %v1321
        %v1327 = vlaneseq
        %v1328 = vshrl.u32 %v1327, 7
        %v1329 = vsub.s32 %v1102, %v1328
        %v1330 = vrot.slane %v1051, %v1329
        %v1331 = vsel %vm1107, %v1330, %v1326
        %v1332 = vlaneseq
        %v1333 = vshrl.u32 %v1332, 7
        %v1334 = vsub.s32 %v1109, %v1333
        %v1335 = vrot.slane %v1052, %v1334
        %v1336 = vsel %vm1114, %v1335, %v1331
        %v1337 = vlaneseq
        %v1338 = vshrl.u32 %v1337, 7
        %v1339 = vsub.s32 %v1116, %v1338
        %v1340 = vrot.slane %v1053, %v1339
        %v1341 = vsel %vm1121, %v1340, %v1336
        %v1342 = vlaneseq
        %v1343 = vshrl.u32 %v1342, 7
        %v1344 = vsub.s32 %v1123, %v1343
        %v1345 = vrot.slane %v1054, %v1344
        %v1346 = vsel %vm1128, %v1345, %v1341
        %v1347 = vlaneseq
        %v1348 = vshrl.u32 %v1347, 7
        %v1349 = vsub.s32 %v1130, %v1348
        %v1350 = vrot.slane %v1055, %v1349
        %v1351 = vsel %vm1135, %v1350, %v1346
        %v1352 = vlaneseq
        %v1353 = vshrl.u32 %v1352, 7
        %v1354 = vsub.s32 %v1137, %v1353
        %v1355 = vrot.slane %v1056, %v1354
        %v1356 = vsel %vm1142, %v1355, %v1351
        %v1357 = vlaneseq
        %v1358 = vshrl.u32 %v1357, 7
        %v1359 = vsub.s32 %v1144, %v1358
        %v1360 = vrot.slane %v1057, %v1359
        %v1361 = vsel %vm1149, %v1360, %v1356
        %v1362 = vlaneseq
        %v1363 = vshrl.u32 %v1362, 7
        %v1364 = vsub.s32 %v1151, %v1363
        %v1365 = vrot.slane %v1058, %v1364
        %v1366 = vsel %vm1156, %v1365, %v1361
        %v1367 = vlaneseq
        %v1368 = vshrl.u32 %v1367, 7
        %v1369 = vsub.s32 %v1158, %v1368
        %v1370 = vrot.slane %v1059, %v1369
        %v1371 = vsel %vm1163, %v1370, %v1366
        %v1372 = vlaneseq
        %v1373 = vshrl.u32 %v1372, 7
        %v1374 = vsub.s32 %v1165, %v1373
        %v1375 = vrot.slane %v1060, %v1374
        %v1376 = vsel %vm1170, %v1375, %v1371
        %v1377 = vlaneseq
        %v1378 = vshrl.u32 %v1377, 7
        %v1379 = vsub.s32 %v1172, %v1378
        %v1380 = vrot.slane %v1061, %v1379
        %v1381 = vsel %vm1177, %v1380, %v1376
        %v1382 = vlaneseq
        %v1383 = vshrl.u32 %v1382, 7
        %v1384 = vsub.s32 %v1179, %v1383
        %v1385 = vrot.slane %v1062, %v1384
        %v1386 = vsel %vm1184, %v1385, %v1381
        %v1387 = vlaneseq
        %v1388 = vshrl.u32 %v1387, 7
        %v1389 = vsub.s32 %v1186, %v1388
        %v1390 = vrot.slane %v1063, %v1389
        %v1391 = vsel %vm1191, %v1390, %v1386
        %v1392 = vlaneseq
        %v1393 = vshrl.u32 %v1392, 7
        %v1394 = vsub.s32 %v1193, %v1393
        %v1395 = vrot.slane %v1064, %v1394
        %v1396 = vsel %vm1198, %v1395, %v1391
        %v1397 = vlaneseq
        %v1398 = vshrl.u32 %v1397, 7
        %v1399 = vsub.s32 %v1090, %v1398
        %v1400 = vrot.slane %v1065, %v1399
        %v1401 = vlaneseq
        %v1402 = vshrl.u32 %v1401, 7
        %v1403 = vsub.s32 %v1095, %v1402
        %v1404 = vrot.slane %v1066, %v1403
        %v1405 = vsel %vm1100, %v1404, %v1400
        %v1406 = vlaneseq
        %v1407 = vshrl.u32 %v1406, 7
        %v1408 = vsub.s32 %v1102, %v1407
        %v1409 = vrot.slane %v1067, %v1408
        %v1410 = vsel %vm1107, %v1409, %v1405
        %v1411 = vlaneseq
        %v1412 = vshrl.u32 %v1411, 7
        %v1413 = vsub.s32 %v1109, %v1412
        %v1414 = vrot.slane %v1068, %v1413
        %v1415 = vsel %vm1114, %v1414, %v1410
        %v1416 = vlaneseq
        %v1417 = vshrl.u32 %v1416, 7
        %v1418 = vsub.s32 %v1116, %v1417
        %v1419 = vrot.slane %v1069, %v1418
        %v1420 = vsel %vm1121, %v1419, %v1415
        %v1421 = vlaneseq
        %v1422 = vshrl.u32 %v1421, 7
        %v1423 = vsub.s32 %v1123, %v1422
        %v1424 = vrot.slane %v1070, %v1423
        %v1425 = vsel %vm1128, %v1424, %v1420
        %v1426 = vlaneseq
        %v1427 = vshrl.u32 %v1426, 7
        %v1428 = vsub.s32 %v1130, %v1427
        %v1429 = vrot.slane %v1071, %v1428
        %v1430 = vsel %vm1135, %v1429, %v1425
        %v1431 = vlaneseq
        %v1432 = vshrl.u32 %v1431, 7
        %v1433 = vsub.s32 %v1137, %v1432
        %v1434 = vrot.slane %v1072, %v1433
        %v1435 = vsel %vm1142, %v1434, %v1430
        %v1436 = vlaneseq
        %v1437 = vshrl.u32 %v1436, 7
        %v1438 = vsub.s32 %v1144, %v1437
        %v1439 = vrot.slane %v1073, %v1438
        %v1440 = vsel %vm1149, %v1439, %v1435
        %v1441 = vlaneseq
        %v1442 = vshrl.u32 %v1441, 7
        %v1443 = vsub.s32 %v1151, %v1442
        %v1444 = vrot.slane %v1074, %v1443
        %v1445 = vsel %vm1156, %v1444, %v1440
        %v1446 = vlaneseq
        %v1447 = vshrl.u32 %v1446, 7
        %v1448 = vsub.s32 %v1158, %v1447
        %v1449 = vrot.slane %v1075, %v1448
        %v1450 = vsel %vm1163, %v1449, %v1445
        %v1451 = vlaneseq
        %v1452 = vshrl.u32 %v1451, 7
        %v1453 = vsub.s32 %v1165, %v1452
        %v1454 = vrot.slane %v1076, %v1453
        %v1455 = vsel %vm1170, %v1454, %v1450
        %v1456 = vlaneseq
        %v1457 = vshrl.u32 %v1456, 7
        %v1458 = vsub.s32 %v1172, %v1457
        %v1459 = vrot.slane %v1077, %v1458
        %v1460 = vsel %vm1177, %v1459, %v1455
        %v1461 = vlaneseq
        %v1462 = vshrl.u32 %v1461, 7
        %v1463 = vsub.s32 %v1179, %v1462
        %v1464 = vrot.slane %v1078, %v1463
        %v1465 = vsel %vm1184, %v1464, %v1460
        %v1466 = vlaneseq
        %v1467 = vshrl.u32 %v1466, 7
        %v1468 = vsub.s32 %v1186, %v1467
        %v1469 = vrot.slane %v1079, %v1468
        %v1470 = vsel %vm1191, %v1469, %v1465
        %v1471 = vlaneseq
        %v1472 = vshrl.u32 %v1471, 7
        %v1473 = vsub.s32 %v1193, %v1472
        %v1474 = vrot.slane %v1080, %v1473
        %v1475 = vsel %vm1198, %v1474, %v1470
        %v1476 = vlaneseq
        %v1477 = vshrl.u32 %v1476, 7
        %v1478 = vsub.s32 %v1090, %v1477
        %v1479 = vrot.slane %v1081, %v1478
        %v1480 = vlaneseq
        %v1481 = vshrl.u32 %v1480, 7
        %v1482 = vsub.s32 %v1095, %v1481
        %v1483 = vrot.slane %v1082, %v1482
        %v1484 = vsel %vm1100, %v1483, %v1479
        %v1485 = vlaneseq
        %v1486 = vshrl.u32 %v1485, 7
        %v1487 = vsub.s32 %v1102, %v1486
        %v1488 = vrot.slane %v1083, %v1487
        %v1489 = vsel %vm1107, %v1488, %v1484
        %v1490 = vlaneseq
        %v1491 = vshrl.u32 %v1490, 7
        %v1492 = vsub.s32 %v1109, %v1491
        %v1493 = vrot.slane %v1084, %v1492
        %v1494 = vsel %vm1114, %v1493, %v1489
        %v1495 = vlaneseq
        %v1496 = vshrl.u32 %v1495, 7
        %v1497 = vsub.s32 %v1116, %v1496
        %v1498 = vrot.slane %v1085, %v1497
        %v1499 = vsel %vm1121, %v1498, %v1494
        %v1500 = vlaneseq
        %v1501 = vshrl.u32 %v1500, 7
        %v1502 = vsub.s32 %v1123, %v1501
        %v1503 = vrot.slane %v1086, %v1502
        %v1504 = vsel %vm1128, %v1503, %v1499
        %v1505 = vlaneseq
        %v1506 = vshrl.u32 %v1505, 7
        %v1507 = vsub.s32 %v1130, %v1506
        %v1508 = vrot.slane %v1087, %v1507
        %v1509 = vsel %vm1135, %v1508, %v1504
        %v1510 = vlaneseq
        %v1511 = vshrl.u32 %v1510, 7
        %v1512 = vsub.s32 %v1137, %v1511
        %v1513 = vrot.slane %v1088, %v1512
        %v1514 = vsel %vm1142, %v1513, %v1509
        %vm1515 = vcmask 1041409
        %v1516 = vsel %vm1515, %v1396, %v1199
        %v1517 = vsel %vm1515, %v1475, %v1278
        %v1518 = vsel %vm1515, %v1514, %v1317
        %v1519 = vpack.c.b16 %v1516, %v1516
        %v1520 = vpack.c.b16 %v1517, %v1517
        %v1521 = vpack.c.b16 %v1518, %v1518
        %v1564 = vunpack.c.l.b16 %v929
        %v1565 = vunpack.c.l.b16 %v930
        %v1566 = vunpack.c.l.b16 %v931
        %v1567 = vunpack.c.l.b16 %v932
        %v1568 = vunpack.c.l.b16 %v933
        %v1569 = vunpack.c.l.b16 %v934
        %v1570 = vunpack.c.l.b16 %v935
        %v1571 = vunpack.c.l.b16 %v936
        %v1572 = vunpack.c.l.b16 %v937
        %v1573 = vunpack.c.l.b16 %v938
        %v1574 = vunpack.c.l.b16 %v939
        %v1575 = vunpack.c.l.b16 %v940
        %v1576 = vunpack.c.l.b16 %v941
        %v1577 = vunpack.c.l.b16 %v942
        %v1578 = vunpack.c.l.b16 %v943
        %v1579 = vunpack.c.l.b16 %v944
        %v1580 = vunpack.c.l.b16 %v945
        %v1581 = vunpack.c.l.b16 %v946
        %v1582 = vunpack.c.l.b16 %v947
        %v1583 = vunpack.c.l.b16 %v948
        %v1584 = vunpack.c.l.b16 %v949
        %v1585 = vunpack.c.l.b16 %v950
        %v1586 = vunpack.c.l.b16 %v951
        %v1587 = vunpack.c.l.b16 %v952
        %v1588 = vunpack.c.l.b16 %v953
        %v1589 = vunpack.c.l.b16 %v954
        %v1590 = vunpack.c.l.b16 %v955
        %v1591 = vunpack.c.l.b16 %v956
        %v1592 = vunpack.c.l.b16 %v957
        %v1593 = vunpack.c.l.b16 %v958
        %v1594 = vunpack.c.l.b16 %v959
        %v1595 = vunpack.c.l.b16 %v960
        %v1596 = vunpack.c.l.b16 %v961
        %v1597 = vunpack.c.l.b16 %v962
        %v1598 = vunpack.c.l.b16 %v963
        %v1599 = vunpack.c.l.b16 %v964
        %v1600 = vunpack.c.l.b16 %v965
        %v1601 = vunpack.c.l.b16 %v966
        %v1602 = vunpack.c.l.b16 %v967
        %v1603 = vunpack.c.l.b16 %v968
        %v1604 = vpack.c.b16 %v1565, %v1564
        %v1605 = vpack.c.b16 %v1567, %v1566
        %v1606 = vpack.c.b16 %v1569, %v1568
        %v1607 = vpack.c.b16 %v1571, %v1570
        %v1608 = vpack.c.b16 %v1573, %v1572
        %v1609 = vpack.c.b16 %v1575, %v1574
        %v1610 = vpack.c.b16 %v1577, %v1576
        %v1611 = vpack.c.b16 %v1579, %v1578
        %v1612 = vpack.c.b16 %v1581, %v1580
        %v1613 = vpack.c.b16 %v1583, %v1582
        %v1614 = vpack.c.b16 %v1585, %v1584
        %v1615 = vpack.c.b16 %v1587, %v1586
        %v1616 = vpack.c.b16 %v1589, %v1588
        %v1617 = vpack.c.b16 %v1591, %v1590
        %v1618 = vpack.c.b16 %v1593, %v1592
        %v1619 = vpack.c.b16 %v1595, %v1594
        %v1620 = vpack.c.b16 %v1597, %v1596
        %v1621 = vpack.c.b16 %v1599, %v1598
        %v1622 = vpack.c.b16 %v1601, %v1600
        %v1623 = vpack.c.b16 %v1603, %v1602
        %v1645 = vsel %vm647, %v1521, 0
        %1647 = vmatprep.subr.bf16.mxu0 0
        %1648 = vmatpush1.bf16.msra.mxu0 %v1604
        %1649 = vmatprep.subr.bf16.mxu0 0
        %1650 = vmatpush1.bf16.msra.mxu0 %v1605
        %1651 = vmatprep.subr.bf16.mxu0 0
        %1652 = vmatpush1.bf16.msra.mxu0 %v1606
        %1653 = vmatprep.subr.bf16.mxu0 0
        %1654 = vmatpush1.bf16.msra.mxu0 %v1607
        %1655 = vmatprep.subr.bf16.mxu0 0
        %1656 = vmatpush1.bf16.msra.mxu0 %v1608
        %1657 = vmatprep.subr.bf16.mxu0 0
        %1658 = vmatpush1.bf16.msra.mxu0 %v1609
        %1659 = vmatprep.subr.bf16.mxu0 0
        %1660 = vmatpush1.bf16.msra.mxu0 %v1610
        %1661 = vmatprep.subr.bf16.mxu0 0
        %1662 = vmatpush1.bf16.msra.mxu0 %v1611
        %1663 = vmatprep.subr.bf16.mxu0 0
        %1664 = vmatpush1.bf16.msra.mxu0 %v1612
        %1665 = vmatprep.subr.bf16.mxu0 0
        %1666 = vmatpush1.bf16.msra.mxu0 %v1613
        %1667 = vmatprep.subr.bf16.mxu0 0
        %1668 = vmatpush1.bf16.msra.mxu0 %v1614
        %1669 = vmatprep.subr.bf16.mxu0 0
        %1670 = vmatpush1.bf16.msra.mxu0 %v1615
        %1671 = vmatprep.subr.bf16.mxu0 0
        %1672 = vmatpush1.bf16.msra.mxu0 %v1616
        %1673 = vmatprep.subr.bf16.mxu0 0
        %1674 = vmatpush1.bf16.msra.mxu0 %v1617
        %1675 = vmatprep.subr.bf16.mxu0 0
        %1676 = vmatpush1.bf16.msra.mxu0 %v1618
        %1677 = vmatprep.subr.bf16.mxu0 0
        %1678 = vmatpush1.bf16.msra.mxu0 %v1619
        %1679 = vmatprep.mubr.bf16.mxu0 %v1520
        %1680 = vmatmul.mubr.bf16.gmra.mrb[0].mxu0 %v1519
        %v1681 = vpop.f32.mrb[0].mxu0
        %v1682 = vadd.f32 0.0, %v1681
        %v1683 = vpop.f32.mrb[0].mxu0
        %v1684 = vpop.f32.mrb[0].mxu0
        %v1685 = vpop.f32.mrb[0].mxu0
        %1686 = vdwg.mxu0
        %1687 = vmatprep.subr.bf16.mxu0 0
        %1688 = vmatpush1.bf16.msra.mxu0 %v1620
        %1689 = vmatprep.subr.bf16.mxu0 0
        %1690 = vmatpush1.bf16.msra.mxu0 %v1621
        %1691 = vmatprep.subr.bf16.mxu0 0
        %1692 = vmatpush1.bf16.msra.mxu0 %v1622
        %1693 = vmatprep.subr.bf16.mxu0 0
        %1694 = vmatpush1.bf16.msra.mxu0 %v1623
        %1695 = vmatprep.subr.bf16.mxu0 0
        %1696 = vmatpush1.bf16.msra.mxu0 0
        %1697 = vmatprep.subr.bf16.mxu0 0
        %1698 = vmatpush1.bf16.msra.mxu0 0
        %1699 = vmatprep.subr.bf16.mxu0 0
        %1700 = vmatpush1.bf16.msra.mxu0 0
        %1701 = vmatprep.subr.bf16.mxu0 0
        %1702 = vmatpush1.bf16.msra.mxu0 0
        %1703 = vmatprep.subr.bf16.mxu0 0
        %1704 = vmatpush1.bf16.msra.mxu0 0
        %1705 = vmatprep.subr.bf16.mxu0 0
        %1706 = vmatpush1.bf16.msra.mxu0 0
        %1707 = vmatprep.subr.bf16.mxu0 0
        %1708 = vmatpush1.bf16.msra.mxu0 0
        %1709 = vmatprep.subr.bf16.mxu0 0
        %1710 = vmatpush1.bf16.msra.mxu0 0
        %1711 = vmatprep.subr.bf16.mxu0 0
        %1712 = vmatpush1.bf16.msra.mxu0 0
        %1713 = vmatprep.subr.bf16.mxu0 0
        %1714 = vmatpush1.bf16.msra.mxu0 0
        %1715 = vmatprep.subr.bf16.mxu0 0
        %1716 = vmatpush1.bf16.msra.mxu0 0
        %1717 = vmatprep.subr.bf16.mxu0 0
        %1718 = vmatpush1.bf16.msra.mxu0 0
        %1719 = vmatprep.mubr.bf16.mxu0 0
        %1720 = vmatmul.mubr.bf16.gmra.mrb[0].mxu0 %v1645
        %v1721 = vpop.f32.mrb[0].mxu0
        %v1722 = vadd.f32 %v1682, %v1721
        %v1723 = vpop.f32.mrb[0].mxu0
        %v1724 = vpop.f32.mrb[0].mxu0
        %v1725 = vpop.f32.mrb[0].mxu0
        %1726 = vdwg.mxu0
        %v1727 = vadd.f32 %v888, %v1722
        %1728 = vst [vmem:[#allocation3] sm:$0x3] %v1727
        // Predicated region
        $region75: #{tpu_custom_call.1} parent=65 // pred_check
          %p1729 = pneg %p120
        $region76: #{tpu_custom_call.1} parent=65 // pred_check_branch
          %1731 = sbr.rel (%p1729) target = $region78
        $region77: #{tpu_custom_call.1} parent=65 // pred_region
          %s1733 = ssub.s32 32, 32
          %1734 = vsyncadd [#allocation4], %s1733
          %s1735 = smul.addr %s19, 32
          %s1736 = scalar_lea.hbm %s3, %s1735
          %s1738 = sshll.u32 [#allocation3], 4
          %s1739 = int_to_ptr.vmem [resolvable:$true] %s1738
          %1741 = dma.vmem_to_hbm [thread:$0]  %s1739, 32, %s1736, [#allocation4]
        $region78: #{tpu_custom_call.1} parent=65 // pred_fallthru
          _
        // Predicated region
        $region79: #{tpu_custom_call.1} parent=65 // pred_check
          %p1742 = pneg %p120
        $region80: #{tpu_custom_call.1} parent=65 // pred_check_branch
          %1744 = sbr.rel (%p1742) target = $region82
        $region81: #{tpu_custom_call.1} parent=65 // pred_region
          %1745 = dma.done [#allocation4], 32
        $region82: #{tpu_custom_call.1} parent=65 // pred_fallthru
          _
      $region66: #{tpu_custom_call.1} parent=5 // pred_fallthru
        _
      %p1746 = scmp.le.s32.totalorder 2, %s10
      // Predicated region
      $region83: #{tpu_custom_call.1} parent=5 // pred_check
        %p1747 = pneg %p1746
      $region84: #{tpu_custom_call.1} parent=5 // pred_check_branch
        %1749 = sbr.rel (%p1747) target = $region86
      $region85: #{tpu_custom_call.1} parent=5 // pred_region
        %s1750 = ssub.s32 %s10, 2
      $region86: #{tpu_custom_call.1} parent=5 // pred_fallthru
        _
    $region6: #{tpu_custom_call.1} parent=1 // loop_footer
      %s14 = sadd.s32 1, %s10
    $region7: #{tpu_custom_call.1} parent=1 // loop_footer_branch
      %9 = sbr.rel target = $region3
    $region8: #{tpu_custom_call.1} parent=1 // loop_exit
      _
    %1751 = vsyncpa [#allocation4], 1
    %s1752 = scalar_lea.sflag [#allocation4], 1
    %1753 = vsyncpa %s1752, 1

</llo_original>
